<compile_context>
chip_gen: v7x
topology: tpu7x:2x2x1
jax: 0.10.0
libtpu: 0.0.40
codegen_flags: <defaults>
</compile_context>

<pallas_src>
import jax
import jax.numpy as jnp
from jax.experimental import pallas as pl
from jax.experimental.pallas import tpu as pltpu

_LANE = 128


def _round_up(x, m):
    return ((x + m - 1) // m) * m


def _make_kernel(num_streams, c_pad, d_total, tk, masked_tail):
    """Fused MultiStreamShared forward, tiled over (batch-block, D-block).

    Kernel args (in order):
      x_0 .. x_{M-1} : (tb, tk)    per-stream activation tiles (native dtype)
      w_img          : (tk, Cp)    shared even-stream classifier weight tile (bf16)
      w_flow         : (tk, Cp)    shared odd-stream classifier weight tile  (bf16)
      b_streams      : (1, M*Cp)   per-stream classifier biases, stacked column order (f32)
      w_fc           : (M*Cp, Cp)  final Linear weight (f32)
      b_fc           : (1, Cp)     final Linear bias (f32)
      out            : (tb, Cp)    output tile (f32)
      acc            : (tb, M*Cp)  f32 accumulator scratch (stacked per-stream logits)
    """

    def kernel(*args):
        x_refs = args[:num_streams]
        (w_img_ref, w_flow_ref, b_streams_ref, w_fc_ref, b_fc_ref,
         out_ref, acc_ref) = args[num_streams:]

        k = pl.program_id(1)

        @pl.when(k == 0)
        def _init():
            acc_ref[...] = jnp.zeros_like(acc_ref)

        # Shared weight tiles are loaded ONCE per step and reused by every
        # stream of their parity (the reason the even/odd grouping exists).
        w_img = w_img_ref[...].astype(jnp.float32)
        w_flow = w_flow_ref[...].astype(jnp.float32)

        if masked_tail:
            # D % tk != 0: the last D-tile extends past D with unspecified
            # padding; zero both operands so NaN/Inf padding cannot leak.
            col = jax.lax.broadcasted_iota(jnp.int32, (1, tk), 1) + k * tk
            valid_cols = col < d_total                            # (1, tk)
            row = jax.lax.broadcasted_iota(jnp.int32, (tk, 1), 0) + k * tk
            valid_rows = row < d_total                            # (tk, 1)
            w_img = jnp.where(valid_rows, w_img, 0.0)
            w_flow = jnp.where(valid_rows, w_flow, 0.0)

        # Static loop over streams; each stream accumulates into its own
        # 128-aligned lane block of the shared accumulator.
        for m in range(num_streams):
            w = w_img if m % 2 == 0 else w_flow
            x = x_refs[m][...].astype(jnp.float32)
            if masked_tail:
                x = jnp.where(valid_cols, x, 0.0)
            acc_ref[:, m * c_pad:(m + 1) * c_pad] += jnp.dot(
                x, w, preferred_element_type=jnp.float32)

        @pl.when(k == pl.num_programs(1) - 1)
        def _finalize():
            # y = relu(stacked logits + biases);  out = y @ w_fc + b_fc
            # (single lane-dense matmul instead of 2*M tiny (B,C)@(C,C) dots).
            y = jnp.maximum(acc_ref[...] + b_streams_ref[...], 0.0)
            out = b_fc_ref[...] + jnp.dot(y, w_fc_ref[...],
                                          preferred_element_type=jnp.float32)
            out_ref[...] = out.astype(out_ref.dtype)

    return kernel


def _pick_tb(batch):
    # v7x megacore: two sublane-aligned row blocks (one per TensorCore) when
    # the batch allows it; otherwise one full-batch block.  NOTE: at tiny B
    # (e.g. the B=2 demo) the activation blocks are far below the 8-sublane
    # tile, so MXU row occupancy is poor — deploy/benchmark with realistic B.
    if batch >= 16 and batch % 16 == 0:
        return batch // 2
    return batch


def _select_tk_and_vmem(d, num_streams, tb, c_pad, x_itemsize, w_itemsize):
    """Largest lane-aligned D-tile fitting a per-generation VMEM budget."""
    try:
        vmem_cap = int(pltpu.get_tpu_info().vmem_capacity_bytes)
    except Exception:
        vmem_cap = 64 * 1024 * 1024        # v7x per-core VMEM: conservative floor
    budget = vmem_cap // 2                 # headroom for compiler temporaries

    resident = (num_streams * c_pad * c_pad * 4        # w_fc
                + tb * num_streams * c_pad * 4         # f32 accumulator scratch
                + 2 * tb * c_pad * 4                   # double-buffered output
                + 2 * (num_streams + 2) * c_pad * 4)   # biases (generous)

    if d <= _LANE:
        tk = d                               # tiny feature dim: one full block
    else:
        best_fit, best_div = None, None
        for cand in (2048, 1024, 512, 256, 128):
            if cand > _round_up(d, _LANE):
                continue
            step = 2 * (num_streams * tb * cand * x_itemsize   # dbl-buffered x tiles
                        + 2 * cand * c_pad * w_itemsize)       # dbl-buffered weights
            if resident + step > budget:
                continue
            if best_fit is None:
                best_fit = cand
            if d % cand == 0 and best_div is None:
                best_div = cand
        if best_div is not None:
            tk = best_div
        elif best_fit is not None:
            tk = best_fit                    # D not divisible: masked tail tile
        else:
            tk = _LANE

    vmem_limit = int(vmem_cap * 3) // 4
    return tk, vmem_limit


def multi_stream_shared_forward(x_list, params):
    """Fused Pallas forward for MultiStreamShared.

    x_list : list (len == num_models) of per-stream NCHW inputs (B, C_in, H, W),
             streamed in their incoming dtype (no boundary cast/concat copy).
    params : (w_img, b_img, w_flow, b_flow, w_fc, b_fc) with
             w_img/w_flow: (D, C), b_img/b_flow: (C,),
             w_fc: (num_models*C, C), b_fc: (C,).
    """
    w_img, b_img, w_flow, b_flow, w_fc, b_fc = params
    num_models = len(x_list)
    assert num_models >= 1
    batch = x_list[0].shape[0]
    n_classes = w_img.shape[1]

    # Flatten each stream (reshape view, not a copy); all streams must share D.
    x_flat = [xi.reshape(batch, -1) for xi in x_list]
    d = x_flat[0].shape[1]
    assert all(xf.shape == (batch, d) for xf in x_flat), \
        "all streams must flatten to the same (B, D)"
    assert w_img.shape == (d, n_classes) and w_flow.shape == (d, n_classes)
    assert w_fc.shape == (num_models * n_classes, n_classes)
    # NOTE: torch's .squeeze().view(-1, M*C) gives the same (B, M*C) layout for
    # B >= 1 with C > 1; this kernel implements that layout directly.

    # Lane-pad the class dim to a multiple of 128 so accumulator updates, the
    # fc-head matmul and the output store are lane-dense (unmasked stores).
    c_pad = _round_up(max(n_classes, _LANE), _LANE)

    def pad_cols(w):
        return jnp.pad(w, ((0, 0), (0, c_pad - n_classes)))

    # Shared classifier weights: lane-pad + bf16 cast in one small one-time
    # copy (they are re-streamed on every D-tile, so their bytes matter).
    w_img_p = pad_cols(w_img).astype(jnp.bfloat16)
    w_flow_p = pad_cols(w_flow).astype(jnp.bfloat16)

    # Per-stream classifier biases in the stacked (B, M*Cp) column order.
    b_streams = jnp.zeros((1, num_models * c_pad), jnp.float32)
    for m in range(num_models):
        b = b_img if m % 2 == 0 else b_flow
        b_streams = b_streams.at[0, m * c_pad:m * c_pad + n_classes].set(
            b.astype(jnp.float32))

    # Final Linear: (M*C, C) -> (M*Cp, Cp), zero-padded, matching layout.
    w_fc_3d = w_fc.reshape(num_models, n_classes, n_classes).astype(jnp.float32)
    w_fc_p = (jnp.zeros((num_models, c_pad, c_pad), jnp.float32)
              .at[:, :n_classes, :n_classes].set(w_fc_3d)
              .reshape(num_models * c_pad, c_pad))
    b_fc_p = jnp.zeros((1, c_pad), jnp.float32).at[0, :n_classes].set(
        b_fc.astype(jnp.float32))

    tb = _pick_tb(batch)
    x_itemsize = jnp.dtype(x_flat[0].dtype).itemsize
    tk, vmem_limit = _select_tk_and_vmem(d, num_models, tb, c_pad,
                                         x_itemsize, 2)
    num_b_blocks = batch // tb
    num_k_blocks = pl.cdiv(d, tk)
    masked_tail = (d % tk) != 0

    kernel = _make_kernel(num_models, c_pad, d, tk, masked_tail)

    x_specs = [pl.BlockSpec((tb, tk), lambda b, k: (b, k))
               for _ in range(num_models)]
    w_spec = pl.BlockSpec((tk, c_pad), lambda b, k: (k, 0))
    in_specs = x_specs + [
        w_spec,                                                       # w_img
        w_spec,                                                       # w_flow
        pl.BlockSpec((1, num_models * c_pad), lambda b, k: (0, 0)),   # b_streams
        pl.BlockSpec((num_models * c_pad, c_pad), lambda b, k: (0, 0)),  # w_fc
        pl.BlockSpec((1, c_pad), lambda b, k: (0, 0)),                # b_fc
    ]

    out_padded = pl.pallas_call(
        kernel,
        out_shape=jax.ShapeDtypeStruct((batch, c_pad), jnp.float32),
        grid=(num_b_blocks, num_k_blocks),
        in_specs=in_specs,
        out_specs=pl.BlockSpec((tb, c_pad), lambda b, k: (b, 0)),
        scratch_shapes=[pltpu.VMEM((tb, num_models * c_pad), jnp.float32)],
        compiler_params=pltpu.CompilerParams(
            dimension_semantics=("parallel", "arbitrary"),
            vmem_limit_bytes=vmem_limit),
    )(*x_flat, w_img_p, w_flow_p, b_streams, w_fc_p, b_fc_p)

    return out_padded[:, :n_classes]


def _reference_forward(x_list, params):
    """Pure-JAX f32 reference mirroring the PyTorch forward."""
    w_img, b_img, w_flow, b_flow, w_fc, b_fc = params
    batch = x_list[0].shape[0]
    ys = []
    for m, xi in enumerate(x_list):
        xf = xi.reshape(batch, -1).astype(jnp.float32)
        w, b = (w_img, b_img) if m % 2 == 0 else (w_flow, b_flow)
        ys.append(xf @ w + b)
    y = jnp.stack(ys, axis=1)                        # (B, M, C) == torch.stack(dim=1)
    y = y.reshape(-1, y.shape[-2] * y.shape[-1])     # == .squeeze().view(-1, M*C)
    return jax.nn.relu(y) @ w_fc + b_fc


if __name__ == "__main__":
    # Small shapes consistent with the module.
    B, C_in, H, W = 2, 4, 16, 16        # NCHW per-stream input
    num_models = 4
    n_classes = 16
    D = C_in * H * W
    fc_input_size = num_models * n_classes

    key = jax.random.PRNGKey(0)
    keys = jax.random.split(key, num_models + 6)

    # Per-stream inputs (streamed in native f32 — no boundary cast/copy).
    x_list = [
        jax.random.normal(keys[m], (B, C_in, H, W), dtype=jnp.float32)
        for m in range(num_models)
    ]

    # Deterministic synthetic parameters.
    w_img = jax.random.normal(keys[num_models + 0], (D, n_classes), jnp.float32) * 0.02
    b_img = jax.random.normal(keys[num_models + 1], (n_classes,), jnp.float32) * 0.01
    w_flow = jax.random.normal(keys[num_models + 2], (D, n_classes), jnp.float32) * 0.02
    b_flow = jax.random.normal(keys[num_models + 3], (n_classes,), jnp.float32) * 0.01
    w_fc = jax.random.normal(keys[num_models + 4],
                             (fc_input_size, n_classes), jnp.float32) * 0.05
    b_fc = jax.random.normal(keys[num_models + 5], (n_classes,), jnp.float32) * 0.01
    params = (w_img, b_img, w_flow, b_flow, w_fc, b_fc)

    out = multi_stream_shared_forward(x_list, params)
    out = jax.block_until_ready(out)

    ref = _reference_forward(x_list, params)
    assert out.shape == (B, n_classes), out.shape
    # Classifier weights are streamed in bf16 (activations stay f32, f32
    # accumulation), so allow a small quantization tolerance vs f32 reference.
    err = float(jnp.max(jnp.abs(out - ref)))
    assert jnp.allclose(out, ref, atol=2e-2, rtol=2e-2), err

    print("KERNEL_OK")
</pallas_src>

<mosaic_0001>
module attributes {stable_mosaic.version = 11 : i64} {
  func.func @kernel(%arg0: i32, %arg1: i32, %arg2: memref<2x1024xf32, #tpu.memory_space<vmem>>, %arg3: memref<2x1024xf32, #tpu.memory_space<vmem>>, %arg4: memref<2x1024xf32, #tpu.memory_space<vmem>>, %arg5: memref<2x1024xf32, #tpu.memory_space<vmem>>, %arg6: memref<1024x128xbf16, #tpu.memory_space<vmem>>, %arg7: memref<1024x128xbf16, #tpu.memory_space<vmem>>, %arg8: memref<1x512xf32, #tpu.memory_space<vmem>>, %arg9: memref<512x128xf32, #tpu.memory_space<vmem>>, %arg10: memref<1x128xf32, #tpu.memory_space<vmem>>, %arg11: memref<2x128xf32, #tpu.memory_space<vmem>>, %arg12: memref<2x512xf32, #tpu.memory_space<vmem>>) attributes {dimension_semantics = [#tpu.dimension_semantics<parallel>, #tpu.dimension_semantics<arbitrary>], iteration_bounds = array<i64: 1, 1>, scalar_prefetch = 0 : i64, scratch_operands = 1 : i64, tpu.core_type = #tpu.core_type<tc>, window_params = [{transform_indices = @transform_0, window_bounds = array<i64: 2, 1024>}, {transform_indices = @transform_1, window_bounds = array<i64: 2, 1024>}, {transform_indices = @transform_2, window_bounds = array<i64: 2, 1024>}, {transform_indices = @transform_3, window_bounds = array<i64: 2, 1024>}, {transform_indices = @transform_4, window_bounds = array<i64: 1024, 128>}, {transform_indices = @transform_5, window_bounds = array<i64: 1024, 128>}, {pipeline_mode = #tpu.pipeline_mode<synchronous>, transform_indices = @transform_6, window_bounds = array<i64: 1, 512>}, {pipeline_mode = #tpu.pipeline_mode<synchronous>, transform_indices = @transform_7, window_bounds = array<i64: 512, 128>}, {pipeline_mode = #tpu.pipeline_mode<synchronous>, transform_indices = @transform_8, window_bounds = array<i64: 1, 128>}, {transform_indices = @transform_9, window_bounds = array<i64: 2, 128>}]} {
    %c0_i32 = arith.constant 0 : i32
    %0 = arith.cmpi eq, %arg1, %c0_i32 : i32
    %1 = arith.extui %0 : i1 to i32
    %c0_i32_0 = arith.constant 0 : i32
    %2 = arith.cmpi ne, %1, %c0_i32_0 : i32
    scf.if %2 {
      %cst_30 = arith.constant 0.000000e+00 : f32
      %30 = vector.broadcast %cst_30 : f32 to vector<2x512xf32>
      %c0_31 = arith.constant 0 : index
      %c0_32 = arith.constant 0 : index
      %31 = vector.load %arg12[%c0_31, %c0_32] : memref<2x512xf32, #tpu.memory_space<vmem>>, vector<2x512xf32>
      tpu.vector_store %arg12[%c0_31, %c0_32], %30 {strides = array<i32>} : memref<2x512xf32, #tpu.memory_space<vmem>>, vector<2x512xf32>,
    } else {
    }
    %c0 = arith.constant 0 : index
    %c0_1 = arith.constant 0 : index
    %3 = vector.load %arg6[%c0, %c0_1] : memref<1024x128xbf16, #tpu.memory_space<vmem>>, vector<1024x128xbf16>
    %4 = arith.extf %3 : vector<1024x128xbf16> to vector<1024x128xf32>
    %c0_2 = arith.constant 0 : index
    %c0_3 = arith.constant 0 : index
    %5 = vector.load %arg7[%c0_2, %c0_3] : memref<1024x128xbf16, #tpu.memory_space<vmem>>, vector<1024x128xbf16>
    %6 = arith.extf %5 : vector<1024x128xbf16> to vector<1024x128xf32>
    %c0_4 = arith.constant 0 : index
    %c0_5 = arith.constant 0 : index
    %7 = vector.load %arg2[%c0_4, %c0_5] : memref<2x1024xf32, #tpu.memory_space<vmem>>, vector<2x1024xf32>
    %c0_6 = arith.constant 0 : index
    %c0_7 = arith.constant 0 : index
    %8 = vector.load %arg12[%c0_6, %c0_7] : memref<2x512xf32, #tpu.memory_space<vmem>>, vector<2x128xf32>
    %cst = arith.constant dense<0.000000e+00> : vector<2x128xf32>
    %9 = tpu.matmul %7, %4, %cst {dimension_numbers = #tpu.dot_dimension_numbers<[1], [0], [0], [1], [0, 0, 1, 1], [], []>} : vector<2x1024xf32>, vector<1024x128xf32>, vector<2x128xf32> -> vector<2x128xf32>
    %10 = arith.addf %8, %9 : vector<2x128xf32>
    %c0_8 = arith.constant 0 : index
    %c0_9 = arith.constant 0 : index
    %11 = vector.load %arg12[%c0_8, %c0_9] : memref<2x512xf32, #tpu.memory_space<vmem>>, vector<2x128xf32>
    tpu.vector_store %arg12[%c0_8, %c0_9], %10 {strides = array<i32>} : memref<2x512xf32, #tpu.memory_space<vmem>>, vector<2x128xf32>,
    %c0_10 = arith.constant 0 : index
    %c0_11 = arith.constant 0 : index
    %12 = vector.load %arg3[%c0_10, %c0_11] : memref<2x1024xf32, #tpu.memory_space<vmem>>, vector<2x1024xf32>
    %c0_12 = arith.constant 0 : index
    %c128 = arith.constant 128 : index
    %13 = vector.load %arg12[%c0_12, %c128] : memref<2x512xf32, #tpu.memory_space<vmem>>, vector<2x128xf32>
    %cst_13 = arith.constant dense<0.000000e+00> : vector<2x128xf32>
    %14 = tpu.matmul %12, %6, %cst_13 {dimension_numbers = #tpu.dot_dimension_numbers<[1], [0], [0], [1], [0, 0, 1, 1], [], []>} : vector<2x1024xf32>, vector<1024x128xf32>, vector<2x128xf32> -> vector<2x128xf32>
    %15 = arith.addf %13, %14 : vector<2x128xf32>
    %c0_14 = arith.constant 0 : index
    %c128_15 = arith.constant 128 : index
    %16 = vector.load %arg12[%c0_14, %c128_15] : memref<2x512xf32, #tpu.memory_space<vmem>>, vector<2x128xf32>
    tpu.vector_store %arg12[%c0_14, %c128_15], %15 {strides = array<i32>} : memref<2x512xf32, #tpu.memory_space<vmem>>, vector<2x128xf32>,
    %c0_16 = arith.constant 0 : index
    %c0_17 = arith.constant 0 : index
    %17 = vector.load %arg4[%c0_16, %c0_17] : memref<2x1024xf32, #tpu.memory_space<vmem>>, vector<2x1024xf32>
    %c0_18 = arith.constant 0 : index
    %c256 = arith.constant 256 : index
    %18 = vector.load %arg12[%c0_18, %c256] : memref<2x512xf32, #tpu.memory_space<vmem>>, vector<2x128xf32>
    %cst_19 = arith.constant dense<0.000000e+00> : vector<2x128xf32>
    %19 = tpu.matmul %17, %4, %cst_19 {dimension_numbers = #tpu.dot_dimension_numbers<[1], [0], [0], [1], [0, 0, 1, 1], [], []>} : vector<2x1024xf32>, vector<1024x128xf32>, vector<2x128xf32> -> vector<2x128xf32>
    %20 = arith.addf %18, %19 : vector<2x128xf32>
    %c0_20 = arith.constant 0 : index
    %c256_21 = arith.constant 256 : index
    %21 = vector.load %arg12[%c0_20, %c256_21] : memref<2x512xf32, #tpu.memory_space<vmem>>, vector<2x128xf32>
    tpu.vector_store %arg12[%c0_20, %c256_21], %20 {strides = array<i32>} : memref<2x512xf32, #tpu.memory_space<vmem>>, vector<2x128xf32>,
    %c0_22 = arith.constant 0 : index
    %c0_23 = arith.constant 0 : index
    %22 = vector.load %arg5[%c0_22, %c0_23] : memref<2x1024xf32, #tpu.memory_space<vmem>>, vector<2x1024xf32>
    %c0_24 = arith.constant 0 : index
    %c384 = arith.constant 384 : index
    %23 = vector.load %arg12[%c0_24, %c384] : memref<2x512xf32, #tpu.memory_space<vmem>>, vector<2x128xf32>
    %cst_25 = arith.constant dense<0.000000e+00> : vector<2x128xf32>
    %24 = tpu.matmul %22, %6, %cst_25 {dimension_numbers = #tpu.dot_dimension_numbers<[1], [0], [0], [1], [0, 0, 1, 1], [], []>} : vector<2x1024xf32>, vector<1024x128xf32>, vector<2x128xf32> -> vector<2x128xf32>
    %25 = arith.addf %23, %24 : vector<2x128xf32>
    %c0_26 = arith.constant 0 : index
    %c384_27 = arith.constant 384 : index
    %26 = vector.load %arg12[%c0_26, %c384_27] : memref<2x512xf32, #tpu.memory_space<vmem>>, vector<2x128xf32>
    tpu.vector_store %arg12[%c0_26, %c384_27], %25 {strides = array<i32>} : memref<2x512xf32, #tpu.memory_space<vmem>>, vector<2x128xf32>,
    %c0_i32_28 = arith.constant 0 : i32
    %27 = arith.cmpi eq, %arg1, %c0_i32_28 : i32
    %28 = arith.extui %27 : i1 to i32
    %c0_i32_29 = arith.constant 0 : i32
    %29 = arith.cmpi ne, %28, %c0_i32_29 : i32
    scf.if %29 {
      %c0_30 = arith.constant 0 : index
      %c0_31 = arith.constant 0 : index
      %30 = vector.load %arg12[%c0_30, %c0_31] : memref<2x512xf32, #tpu.memory_space<vmem>>, vector<2x512xf32>
      %c0_32 = arith.constant 0 : index
      %c0_33 = arith.constant 0 : index
      %31 = vector.load %arg8[%c0_32, %c0_33] : memref<1x512xf32, #tpu.memory_space<vmem>>, vector<1x512xf32>
      %32 = vector.broadcast %31 : vector<1x512xf32> to vector<2x512xf32>
      %33 = arith.addf %30, %32 : vector<2x512xf32>
      %cst_34 = arith.constant 0.000000e+00 : f32
      %34 = vector.broadcast %cst_34 : f32 to vector<2x512xf32>
      %35 = arith.maximumf %33, %34 : vector<2x512xf32>
      %c0_35 = arith.constant 0 : index
      %c0_36 = arith.constant 0 : index
      %36 = vector.load %arg10[%c0_35, %c0_36] : memref<1x128xf32, #tpu.memory_space<vmem>>, vector<1x128xf32>
      %c0_37 = arith.constant 0 : index
      %c0_38 = arith.constant 0 : index
      %37 = vector.load %arg9[%c0_37, %c0_38] : memref<512x128xf32, #tpu.memory_space<vmem>>, vector<512x128xf32>
      %cst_39 = arith.constant dense<0.000000e+00> : vector<2x128xf32>
      %38 = tpu.matmul %35, %37, %cst_39 {dimension_numbers = #tpu.dot_dimension_numbers<[1], [0], [0], [1], [0, 0, 1, 1], [], []>} : vector<2x512xf32>, vector<512x128xf32>, vector<2x128xf32> -> vector<2x128xf32>
      %39 = vector.broadcast %36 : vector<1x128xf32> to vector<2x128xf32>
      %40 = arith.addf %39, %38 : vector<2x128xf32>
      %c0_40 = arith.constant 0 : index
      %c0_41 = arith.constant 0 : index
      %41 = vector.load %arg11[%c0_40, %c0_41] : memref<2x128xf32, #tpu.memory_space<vmem>>, vector<2x128xf32>
      tpu.vector_store %arg11[%c0_40, %c0_41], %40 {strides = array<i32>} : memref<2x128xf32, #tpu.memory_space<vmem>>, vector<2x128xf32>,
    } else {
    }
    return
  }
  func.func @transform_0(%arg0: i32, %arg1: i32) -> (i32, i32) {
    %c0_i32 = arith.constant 0 : i32
    return %arg0, %arg1 : i32, i32
  }
  func.func @transform_1(%arg0: i32, %arg1: i32) -> (i32, i32) {
    %c0_i32 = arith.constant 0 : i32
    return %arg0, %arg1 : i32, i32
  }
  func.func @transform_2(%arg0: i32, %arg1: i32) -> (i32, i32) {
    %c0_i32 = arith.constant 0 : i32
    return %arg0, %arg1 : i32, i32
  }
  func.func @transform_3(%arg0: i32, %arg1: i32) -> (i32, i32) {
    %c0_i32 = arith.constant 0 : i32
    return %arg0, %arg1 : i32, i32
  }
  func.func @transform_4(%arg0: i32, %arg1: i32) -> (i32, i32) {
    %c0_i32 = arith.constant 0 : i32
    %c0_i32_0 = arith.constant 0 : i32
    return %arg1, %c0_i32 : i32, i32
  }
  func.func @transform_5(%arg0: i32, %arg1: i32) -> (i32, i32) {
    %c0_i32 = arith.constant 0 : i32
    %c0_i32_0 = arith.constant 0 : i32
    return %arg1, %c0_i32 : i32, i32
  }
  func.func @transform_6(%arg0: i32, %arg1: i32) -> (i32, i32) {
    %c0_i32 = arith.constant 0 : i32
    %c0_i32_0 = arith.constant 0 : i32
    %c0_i32_1 = arith.constant 0 : i32
    return %c0_i32, %c0_i32_0 : i32, i32
  }
  func.func @transform_7(%arg0: i32, %arg1: i32) -> (i32, i32) {
    %c0_i32 = arith.constant 0 : i32
    %c0_i32_0 = arith.constant 0 : i32
    %c0_i32_1 = arith.constant 0 : i32
    return %c0_i32, %c0_i32_0 : i32, i32
  }
  func.func @transform_8(%arg0: i32, %arg1: i32) -> (i32, i32) {
    %c0_i32 = arith.constant 0 : i32
    %c0_i32_0 = arith.constant 0 : i32
    %c0_i32_1 = arith.constant 0 : i32
    return %c0_i32, %c0_i32_0 : i32, i32
  }
  func.func @transform_9(%arg0: i32, %arg1: i32) -> (i32, i32) {
    %c0_i32 = arith.constant 0 : i32
    %c0_i32_0 = arith.constant 0 : i32
    return %arg0, %c0_i32 : i32, i32
  }
}

</mosaic_0001>

<llo_original>
// kernel: tpu_custom_call.1
$region0: #{tpu_custom_call.1}
  #allocation0 [shape = 'u32[]', space=smem, size = 0x4, offset = 0x4, fixed_abs, tag = 'smem constant byte address 0x4 - core index']
  #allocation1 [shape = 'u32[144,128]{1,0:T(1,128)}', space=vmem, size = 0x12000, scoped, tag = 'internal scratch']
  #allocation2 [shape = 'f32[2,512]{1,0:T(2,128)}', space=vmem, size = 0x1000, scoped, tag = 'scratch operand']
  %s0 = inlined_call_operand.hbm [shape: f32[2,1024], index: 0, kind: input, shape index: {}]
  %s1 = inlined_call_operand.hbm [shape: f32[2,1024], index: 1, kind: input, shape index: {}]
  %s2 = inlined_call_operand.hbm [shape: f32[2,1024], index: 2, kind: input, shape index: {}]
  %s3 = inlined_call_operand.hbm [shape: f32[2,1024], index: 3, kind: input, shape index: {}]
  %s4 = inlined_call_operand.hbm [shape: bf16[1024,128], index: 4, kind: input, shape index: {}]
  %s5 = inlined_call_operand.hbm [shape: bf16[1024,128], index: 5, kind: input, shape index: {}]
  %s6 = inlined_call_operand.vmem [shape: f32[1,512], index: 6, kind: input, shape index: {}]
  %s7 = inlined_call_operand.hbm [shape: f32[512,128], index: 7, kind: input, shape index: {}]
  %s8 = inlined_call_operand.vmem [shape: f32[1,128], index: 8, kind: input, shape index: {}]
  %s9 = inlined_call_operand.hbm [shape: f32[2,128], index: 9, kind: output, shape index: {}]
  %s10 = sld [smem:[#allocation0]]
  $region82: #{tpu_custom_call.1} parent=0
    _
  %s12 = ssub.s32 1, %s10
  %s13 = scalar_select 0, %s12, %s10
  $region1: #{tpu_custom_call.1} parent=0
    #allocation3 [shape = 'u8[8192]{0}', space=vmem, size = 0x2000, scoped, tag = 'input window, operand 0, single buffered']
    #allocation4 [shape = 's32[1]{0}', space=sflag, size = 0x4, scoped, tag = 'scoped memory for tpu_custom_call.1']
    #allocation5 [shape = 's32[1]{0}', space=sflag, size = 0x4, scoped, tag = 'scoped memory for tpu_custom_call.1']
    #allocation6 [shape = 'u8[8192]{0}', space=vmem, size = 0x2000, scoped, tag = 'input window, operand 1, single buffered']
    #allocation7 [shape = 's32[1]{0}', space=sflag, size = 0x4, scoped, tag = 'scoped memory for tpu_custom_call.1']
    #allocation8 [shape = 'u8[8192]{0}', space=vmem, size = 0x2000, scoped, tag = 'input window, operand 2, single buffered']
    #allocation9 [shape = 'u8[8192]{0}', space=vmem, size = 0x2000, scoped, tag = 'input window, operand 3, single buffered']
    #allocation10 [shape = 's32[1]{0}', space=sflag, size = 0x4, scoped, tag = 'scoped memory for tpu_custom_call.1']
    #allocation11 [shape = 'u8[262144]{0}', space=vmem, size = 0x40000, scoped, tag = 'input window, operand 4, single buffered']
    #allocation12 [shape = 'u8[262144]{0}', space=vmem, size = 0x40000, scoped, tag = 'input window, operand 5, single buffered']
    #allocation13 [shape = 's32[1]{0}', space=sflag, size = 0x4, scoped, tag = 'scoped memory for tpu_custom_call.1']
    #allocation14 [shape = 'u8[262144]{0}', space=vmem, size = 0x40000, scoped, tag = 'input window, operand 7, single buffered']
    #allocation15 [shape = 'u8[1024]{0}', space=vmem, size = 0x400, scoped, tag = 'output window, operand 0, single buffered']
    %14 = vsyncpa [#allocation4], 0
    %15 = vsyncpa [#allocation7], 0
    %16 = vsyncpa [#allocation10], 0
    %17 = vsyncpa [#allocation13], 0
    %18 = vsyncpa [#allocation5], 0
    // Predicated region
    $region2: #{tpu_custom_call.1} parent=1 // pred_check
      _
    $region3: #{tpu_custom_call.1} parent=1 // pred_check_branch
      %20 = sbr.rel (0) target = $region5
    $region4: #{tpu_custom_call.1} parent=1 // pred_region
      %s22 = ssub.s32 256, 256
      %23 = vsyncadd [#allocation4], %s22
      %s25 = sshll.u32 [#allocation3], 4
      %s26 = int_to_ptr.vmem [resolvable:$true] %s25
      %28 = dma.hbm_to_vmem [thread:$0]  %s0, 256, %s26, [#allocation4]
    $region5: #{tpu_custom_call.1} parent=1 // pred_fallthru
      _
    // Predicated region
    $region6: #{tpu_custom_call.1} parent=1 // pred_check
      _
    $region7: #{tpu_custom_call.1} parent=1 // pred_check_branch
      %30 = sbr.rel (0) target = $region9
    $region8: #{tpu_custom_call.1} parent=1 // pred_region
      %s32 = ssub.s32 256, 256
      %33 = vsyncadd [#allocation7], %s32
      %s35 = sshll.u32 [#allocation6], 4
      %s36 = int_to_ptr.vmem [resolvable:$true] %s35
      %38 = dma.hbm_to_vmem [thread:$0]  %s1, 256, %s36, [#allocation7]
    $region9: #{tpu_custom_call.1} parent=1 // pred_fallthru
      _
    // Predicated region
    $region10: #{tpu_custom_call.1} parent=1 // pred_check
      _
    $region11: #{tpu_custom_call.1} parent=1 // pred_check_branch
      %40 = sbr.rel (0) target = $region13
    $region12: #{tpu_custom_call.1} parent=1 // pred_region
      %s42 = ssub.s32 256, 256
      %43 = vsyncadd [#allocation7], %s42
      %s45 = sshll.u32 [#allocation8], 4
      %s46 = int_to_ptr.vmem [resolvable:$true] %s45
      %48 = dma.hbm_to_vmem [thread:$0]  %s2, 256, %s46, [#allocation7]
    $region13: #{tpu_custom_call.1} parent=1 // pred_fallthru
      _
    // Predicated region
    $region14: #{tpu_custom_call.1} parent=1 // pred_check
      _
    $region15: #{tpu_custom_call.1} parent=1 // pred_check_branch
      %50 = sbr.rel (0) target = $region17
    $region16: #{tpu_custom_call.1} parent=1 // pred_region
      %s52 = ssub.s32 256, 256
      %53 = vsyncadd [#allocation10], %s52
      %s55 = sshll.u32 [#allocation9], 4
      %s56 = int_to_ptr.vmem [resolvable:$true] %s55
      %58 = dma.hbm_to_vmem [thread:$0]  %s3, 256, %s56, [#allocation10]
    $region17: #{tpu_custom_call.1} parent=1 // pred_fallthru
      _
    // Predicated region
    $region18: #{tpu_custom_call.1} parent=1 // pred_check
      _
    $region19: #{tpu_custom_call.1} parent=1 // pred_check_branch
      %60 = sbr.rel (0) target = $region21
    $region20: #{tpu_custom_call.1} parent=1 // pred_region
      %s62 = ssub.s32 8192, 8192
      %63 = vsyncadd [#allocation10], %s62
      %s64 = sshll.u32 [#allocation11], 4
      %s65 = int_to_ptr.vmem [resolvable:$true] %s64
      %70 = dma.hbm_to_vmem [thread:$0]  %s4, 8192, %s65, [#allocation10], 64, 64, 4
    $region21: #{tpu_custom_call.1} parent=1 // pred_fallthru
      _
    // Predicated region
    $region22: #{tpu_custom_call.1} parent=1 // pred_check
      _
    $region23: #{tpu_custom_call.1} parent=1 // pred_check_branch
      %72 = sbr.rel (0) target = $region25
    $region24: #{tpu_custom_call.1} parent=1 // pred_region
      %s74 = ssub.s32 8192, 8192
      %75 = vsyncadd [#allocation13], %s74
      %s76 = sshll.u32 [#allocation12], 4
      %s77 = int_to_ptr.vmem [resolvable:$true] %s76
      %82 = dma.hbm_to_vmem [thread:$0]  %s5, 8192, %s77, [#allocation13], 64, 64, 4
    $region25: #{tpu_custom_call.1} parent=1 // pred_fallthru
      _
    // Predicated region
    $region26: #{tpu_custom_call.1} parent=1 // pred_check
      _
    $region27: #{tpu_custom_call.1} parent=1 // pred_check_branch
      %84 = sbr.rel (0) target = $region29
    $region28: #{tpu_custom_call.1} parent=1 // pred_region
      _
    $region29: #{tpu_custom_call.1} parent=1 // pred_fallthru
      _
    // Predicated region
    $region30: #{tpu_custom_call.1} parent=1 // pred_check
      _
    $region31: #{tpu_custom_call.1} parent=1 // pred_check_branch
      %86 = sbr.rel (0) target = $region33
    $region32: #{tpu_custom_call.1} parent=1 // pred_region
      %s88 = ssub.s32 8192, 8192
      %89 = vsyncadd [#allocation13], %s88
      %s90 = sshll.u32 [#allocation14], 4
      %s91 = int_to_ptr.vmem [resolvable:$true] %s90
      %96 = dma.hbm_to_vmem [thread:$0]  %s7, 8192, %s91, [#allocation13], 128, 128, 8
    $region33: #{tpu_custom_call.1} parent=1 // pred_fallthru
      _
    // Predicated region
    $region34: #{tpu_custom_call.1} parent=1 // pred_check
      _
    $region35: #{tpu_custom_call.1} parent=1 // pred_check_branch
      %98 = sbr.rel (0) target = $region37
    $region36: #{tpu_custom_call.1} parent=1 // pred_region
      _
    $region37: #{tpu_custom_call.1} parent=1 // pred_fallthru
      _
    // Predicated region
    $region38: #{tpu_custom_call.1} parent=1 // pred_check
      _
    $region39: #{tpu_custom_call.1} parent=1 // pred_check_branch
      %100 = sbr.rel (0) target = $region41
    $region40: #{tpu_custom_call.1} parent=1 // pred_region
      %101 = dma.done [#allocation4], 256
    $region41: #{tpu_custom_call.1} parent=1 // pred_fallthru
      _
    // Predicated region
    $region42: #{tpu_custom_call.1} parent=1 // pred_check
      _
    $region43: #{tpu_custom_call.1} parent=1 // pred_check_branch
      %103 = sbr.rel (0) target = $region45
    $region44: #{tpu_custom_call.1} parent=1 // pred_region
      %104 = dma.done [#allocation7], 256
    $region45: #{tpu_custom_call.1} parent=1 // pred_fallthru
      _
    // Predicated region
    $region46: #{tpu_custom_call.1} parent=1 // pred_check
      _
    $region47: #{tpu_custom_call.1} parent=1 // pred_check_branch
      %106 = sbr.rel (0) target = $region49
    $region48: #{tpu_custom_call.1} parent=1 // pred_region
      %107 = dma.done [#allocation7], 256
    $region49: #{tpu_custom_call.1} parent=1 // pred_fallthru
      _
    // Predicated region
    $region50: #{tpu_custom_call.1} parent=1 // pred_check
      _
    $region51: #{tpu_custom_call.1} parent=1 // pred_check_branch
      %109 = sbr.rel (0) target = $region53
    $region52: #{tpu_custom_call.1} parent=1 // pred_region
      %110 = dma.done [#allocation10], 256
    $region53: #{tpu_custom_call.1} parent=1 // pred_fallthru
      _
    // Predicated region
    $region54: #{tpu_custom_call.1} parent=1 // pred_check
      _
    $region55: #{tpu_custom_call.1} parent=1 // pred_check_branch
      %112 = sbr.rel (0) target = $region57
    $region56: #{tpu_custom_call.1} parent=1 // pred_region
      %113 = dma.done [#allocation10], 8192
    $region57: #{tpu_custom_call.1} parent=1 // pred_fallthru
      _
    // Predicated region
    $region58: #{tpu_custom_call.1} parent=1 // pred_check
      _
    $region59: #{tpu_custom_call.1} parent=1 // pred_check_branch
      %115 = sbr.rel (0) target = $region61
    $region60: #{tpu_custom_call.1} parent=1 // pred_region
      %116 = dma.done [#allocation13], 8192
    $region61: #{tpu_custom_call.1} parent=1 // pred_fallthru
      _
    // Predicated region
    $region62: #{tpu_custom_call.1} parent=1 // pred_check
      _
    $region63: #{tpu_custom_call.1} parent=1 // pred_check_branch
      %118 = sbr.rel (0) target = $region65
    $region64: #{tpu_custom_call.1} parent=1 // pred_region
      %119 = dma.done [#allocation13], 8192
    $region65: #{tpu_custom_call.1} parent=1 // pred_fallthru
      _
    %p120 = scmp.eq.s32.totalorder 0, 0
    // Predicated region
    $region66: #{tpu_custom_call.1} parent=1 // pred_check
      %p121 = pneg %p120
    $region67: #{tpu_custom_call.1} parent=1 // pred_check_branch
      %123 = sbr.rel (%p121) target = $region69
    $region68: #{tpu_custom_call.1} parent=1 // pred_region
      %124 = vst [vmem:[#allocation2] sm:$0xff] 0.0
    $region69: #{tpu_custom_call.1} parent=1 // pred_fallthru
      _
    %v125 = vld [vmem:[#allocation11] sm:$0xf]
    %v126 = vld [vmem:[#allocation11 + $0x4] sm:$0xf]
    %v127 = vld [vmem:[#allocation11 + $0x8] sm:$0xf]
    %v128 = vld [vmem:[#allocation11 + $0xc] sm:$0xf]
    %v129 = vld [vmem:[#allocation11 + $0x10] sm:$0xf]
    %v130 = vld [vmem:[#allocation11 + $0x14] sm:$0xf]
    %v131 = vld [vmem:[#allocation11 + $0x18] sm:$0xf]
    %v132 = vld [vmem:[#allocation11 + $0x1c] sm:$0xf]
    %v133 = vld [vmem:[#allocation11 + $0x20] sm:$0xf]
    %v134 = vld [vmem:[#allocation11 + $0x24] sm:$0xf]
    %v135 = vld [vmem:[#allocation11 + $0x28] sm:$0xf]
    %v136 = vld [vmem:[#allocation11 + $0x2c] sm:$0xf]
    %v137 = vld [vmem:[#allocation11 + $0x30] sm:$0xf]
    %v138 = vld [vmem:[#allocation11 + $0x34] sm:$0xf]
    %v139 = vld [vmem:[#allocation11 + $0x38] sm:$0xf]
    %v140 = vld [vmem:[#allocation11 + $0x3c] sm:$0xf]
    %v141 = vld [vmem:[#allocation11 + $0x40] sm:$0xf]
    %v142 = vld [vmem:[#allocation11 + $0x44] sm:$0xf]
    %v143 = vld [vmem:[#allocation11 + $0x48] sm:$0xf]
    %v144 = vld [vmem:[#allocation11 + $0x4c] sm:$0xf]
    %v145 = vld [vmem:[#allocation11 + $0x50] sm:$0xf]
    %v146 = vld [vmem:[#allocation11 + $0x54] sm:$0xf]
    %v147 = vld [vmem:[#allocation11 + $0x58] sm:$0xf]
    %v148 = vld [vmem:[#allocation11 + $0x5c] sm:$0xf]
    %v149 = vld [vmem:[#allocation11 + $0x60] sm:$0xf]
    %v150 = vld [vmem:[#allocation11 + $0x64] sm:$0xf]
    %v151 = vld [vmem:[#allocation11 + $0x68] sm:$0xf]
    %v152 = vld [vmem:[#allocation11 + $0x6c] sm:$0xf]
    %v153 = vld [vmem:[#allocation11 + $0x70] sm:$0xf]
    %v154 = vld [vmem:[#allocation11 + $0x74] sm:$0xf]
    %v155 = vld [vmem:[#allocation11 + $0x78] sm:$0xf]
    %v156 = vld [vmem:[#allocation11 + $0x7c] sm:$0xf]
    %v157 = vld [vmem:[#allocation11 + $0x80] sm:$0xf]
    %v158 = vld [vmem:[#allocation11 + $0x84] sm:$0xf]
    %v159 = vld [vmem:[#allocation11 + $0x88] sm:$0xf]
    %v160 = vld [vmem:[#allocation11 + $0x8c] sm:$0xf]
    %v161 = vld [vmem:[#allocation11 + $0x90] sm:$0xf]
    %v162 = vld [vmem:[#allocation11 + $0x94] sm:$0xf]
    %v163 = vld [vmem:[#allocation11 + $0x98] sm:$0xf]
    %v164 = vld [vmem:[#allocation11 + $0x9c] sm:$0xf]
    %v165 = vld [vmem:[#allocation11 + $0xa0] sm:$0xf]
    %v166 = vld [vmem:[#allocation11 + $0xa4] sm:$0xf]
    %v167 = vld [vmem:[#allocation11 + $0xa8] sm:$0xf]
    %v168 = vld [vmem:[#allocation11 + $0xac] sm:$0xf]
    %v169 = vld [vmem:[#allocation11 + $0xb0] sm:$0xf]
    %v170 = vld [vmem:[#allocation11 + $0xb4] sm:$0xf]
    %v171 = vld [vmem:[#allocation11 + $0xb8] sm:$0xf]
    %v172 = vld [vmem:[#allocation11 + $0xbc] sm:$0xf]
    %v173 = vld [vmem:[#allocation11 + $0xc0] sm:$0xf]
    %v174 = vld [vmem:[#allocation11 + $0xc4] sm:$0xf]
    %v175 = vld [vmem:[#allocation11 + $0xc8] sm:$0xf]
    %v176 = vld [vmem:[#allocation11 + $0xcc] sm:$0xf]
    %v177 = vld [vmem:[#allocation11 + $0xd0] sm:$0xf]
    %v178 = vld [vmem:[#allocation11 + $0xd4] sm:$0xf]
    %v179 = vld [vmem:[#allocation11 + $0xd8] sm:$0xf]
    %v180 = vld [vmem:[#allocation11 + $0xdc] sm:$0xf]
    %v181 = vld [vmem:[#allocation11 + $0xe0] sm:$0xf]
    %v182 = vld [vmem:[#allocation11 + $0xe4] sm:$0xf]
    %v183 = vld [vmem:[#allocation11 + $0xe8] sm:$0xf]
    %v184 = vld [vmem:[#allocation11 + $0xec] sm:$0xf]
    %v185 = vld [vmem:[#allocation11 + $0xf0] sm:$0xf]
    %v186 = vld [vmem:[#allocation11 + $0xf4] sm:$0xf]
    %v187 = vld [vmem:[#allocation11 + $0xf8] sm:$0xf]
    %v188 = vld [vmem:[#allocation11 + $0xfc] sm:$0xf]
    %v189 = vld [vmem:[#allocation11 + $0x100] sm:$0xf]
    %v190 = vld [vmem:[#allocation11 + $0x104] sm:$0xf]
    %v191 = vld [vmem:[#allocation11 + $0x108] sm:$0xf]
    %v192 = vld [vmem:[#allocation11 + $0x10c] sm:$0xf]
    %v193 = vld [vmem:[#allocation11 + $0x110] sm:$0xf]
    %v194 = vld [vmem:[#allocation11 + $0x114] sm:$0xf]
    %v195 = vld [vmem:[#allocation11 + $0x118] sm:$0xf]
    %v196 = vld [vmem:[#allocation11 + $0x11c] sm:$0xf]
    %v197 = vld [vmem:[#allocation11 + $0x120] sm:$0xf]
    %v198 = vld [vmem:[#allocation11 + $0x124] sm:$0xf]
    %v199 = vld [vmem:[#allocation11 + $0x128] sm:$0xf]
    %v200 = vld [vmem:[#allocation11 + $0x12c] sm:$0xf]
    %v201 = vld [vmem:[#allocation11 + $0x130] sm:$0xf]
    %v202 = vld [vmem:[#allocation11 + $0x134] sm:$0xf]
    %v203 = vld [vmem:[#allocation11 + $0x138] sm:$0xf]
    %v204 = vld [vmem:[#allocation11 + $0x13c] sm:$0xf]
    %v205 = vld [vmem:[#allocation11 + $0x140] sm:$0xf]
    %v206 = vld [vmem:[#allocation11 + $0x144] sm:$0xf]
    %v207 = vld [vmem:[#allocation11 + $0x148] sm:$0xf]
    %v208 = vld [vmem:[#allocation11 + $0x14c] sm:$0xf]
    %v209 = vld [vmem:[#allocation11 + $0x150] sm:$0xf]
    %v210 = vld [vmem:[#allocation11 + $0x154] sm:$0xf]
    %v211 = vld [vmem:[#allocation11 + $0x158] sm:$0xf]
    %v212 = vld [vmem:[#allocation11 + $0x15c] sm:$0xf]
    %v213 = vld [vmem:[#allocation11 + $0x160] sm:$0xf]
    %v214 = vld [vmem:[#allocation11 + $0x164] sm:$0xf]
    %v215 = vld [vmem:[#allocation11 + $0x168] sm:$0xf]
    %v216 = vld [vmem:[#allocation11 + $0x16c] sm:$0xf]
    %v217 = vld [vmem:[#allocation11 + $0x170] sm:$0xf]
    %v218 = vld [vmem:[#allocation11 + $0x174] sm:$0xf]
    %v219 = vld [vmem:[#allocation11 + $0x178] sm:$0xf]
    %v220 = vld [vmem:[#allocation11 + $0x17c] sm:$0xf]
    %v221 = vld [vmem:[#allocation11 + $0x180] sm:$0xf]
    %v222 = vld [vmem:[#allocation11 + $0x184] sm:$0xf]
    %v223 = vld [vmem:[#allocation11 + $0x188] sm:$0xf]
    %v224 = vld [vmem:[#allocation11 + $0x18c] sm:$0xf]
    %v225 = vld [vmem:[#allocation11 + $0x190] sm:$0xf]
    %v226 = vld [vmem:[#allocation11 + $0x194] sm:$0xf]
    %v227 = vld [vmem:[#allocation11 + $0x198] sm:$0xf]
    %v228 = vld [vmem:[#allocation11 + $0x19c] sm:$0xf]
    %v229 = vld [vmem:[#allocation11 + $0x1a0] sm:$0xf]
    %v230 = vld [vmem:[#allocation11 + $0x1a4] sm:$0xf]
    %v231 = vld [vmem:[#allocation11 + $0x1a8] sm:$0xf]
    %v232 = vld [vmem:[#allocation11 + $0x1ac] sm:$0xf]
    %v233 = vld [vmem:[#allocation11 + $0x1b0] sm:$0xf]
    %v234 = vld [vmem:[#allocation11 + $0x1b4] sm:$0xf]
    %v235 = vld [vmem:[#allocation11 + $0x1b8] sm:$0xf]
    %v236 = vld [vmem:[#allocation11 + $0x1bc] sm:$0xf]
    %v237 = vld [vmem:[#allocation11 + $0x1c0] sm:$0xf]
    %v238 = vld [vmem:[#allocation11 + $0x1c4] sm:$0xf]
    %v239 = vld [vmem:[#allocation11 + $0x1c8] sm:$0xf]
    %v240 = vld [vmem:[#allocation11 + $0x1cc] sm:$0xf]
    %v241 = vld [vmem:[#allocation11 + $0x1d0] sm:$0xf]
    %v242 = vld [vmem:[#allocation11 + $0x1d4] sm:$0xf]
    %v243 = vld [vmem:[#allocation11 + $0x1d8] sm:$0xf]
    %v244 = vld [vmem:[#allocation11 + $0x1dc] sm:$0xf]
    %v245 = vld [vmem:[#allocation11 + $0x1e0] sm:$0xf]
    %v246 = vld [vmem:[#allocation11 + $0x1e4] sm:$0xf]
    %v247 = vld [vmem:[#allocation11 + $0x1e8] sm:$0xf]
    %v248 = vld [vmem:[#allocation11 + $0x1ec] sm:$0xf]
    %v249 = vld [vmem:[#allocation11 + $0x1f0] sm:$0xf]
    %v250 = vld [vmem:[#allocation11 + $0x1f4] sm:$0xf]
    %v251 = vld [vmem:[#allocation11 + $0x1f8] sm:$0xf]
    %v252 = vld [vmem:[#allocation11 + $0x1fc] sm:$0xf]
    %v253 = vunpack.c.l.bf16 %v125
    %v254 = vunpack.c.l.bf16 %v126
    %v255 = vunpack.c.l.bf16 %v127
    %v256 = vunpack.c.l.bf16 %v128
    %v257 = vunpack.c.l.bf16 %v129
    %v258 = vunpack.c.l.bf16 %v130
    %v259 = vunpack.c.l.bf16 %v131
    %v260 = vunpack.c.l.bf16 %v132
    %v261 = vunpack.c.l.bf16 %v133
    %v262 = vunpack.c.l.bf16 %v134
    %v263 = vunpack.c.l.bf16 %v135
    %v264 = vunpack.c.l.bf16 %v136
    %v265 = vunpack.c.l.bf16 %v137
    %v266 = vunpack.c.l.bf16 %v138
    %v267 = vunpack.c.l.bf16 %v139
    %v268 = vunpack.c.l.bf16 %v140
    %v269 = vunpack.c.l.bf16 %v141
    %v270 = vunpack.c.l.bf16 %v142
    %v271 = vunpack.c.l.bf16 %v143
    %v272 = vunpack.c.l.bf16 %v144
    %v273 = vunpack.c.l.bf16 %v145
    %v274 = vunpack.c.l.bf16 %v146
    %v275 = vunpack.c.l.bf16 %v147
    %v276 = vunpack.c.l.bf16 %v148
    %v277 = vunpack.c.l.bf16 %v149
    %v278 = vunpack.c.l.bf16 %v150
    %v279 = vunpack.c.l.bf16 %v151
    %v280 = vunpack.c.l.bf16 %v152
    %v281 = vunpack.c.l.bf16 %v153
    %v282 = vunpack.c.l.bf16 %v154
    %v283 = vunpack.c.l.bf16 %v155
    %v284 = vunpack.c.l.bf16 %v156
    %v285 = vunpack.c.l.bf16 %v157
    %v286 = vunpack.c.l.bf16 %v158
    %v287 = vunpack.c.l.bf16 %v159
    %v288 = vunpack.c.l.bf16 %v160
    %v289 = vunpack.c.l.bf16 %v161
    %v290 = vunpack.c.l.bf16 %v162
    %v291 = vunpack.c.l.bf16 %v163
    %v292 = vunpack.c.l.bf16 %v164
    %v293 = vunpack.c.l.bf16 %v165
    %v294 = vunpack.c.l.bf16 %v166
    %v295 = vunpack.c.l.bf16 %v167
    %v296 = vunpack.c.l.bf16 %v168
    %v297 = vunpack.c.l.bf16 %v169
    %v298 = vunpack.c.l.bf16 %v170
    %v299 = vunpack.c.l.bf16 %v171
    %v300 = vunpack.c.l.bf16 %v172
    %v301 = vunpack.c.l.bf16 %v173
    %v302 = vunpack.c.l.bf16 %v174
    %v303 = vunpack.c.l.bf16 %v175
    %v304 = vunpack.c.l.bf16 %v176
    %v305 = vunpack.c.l.bf16 %v177
    %v306 = vunpack.c.l.bf16 %v178
    %v307 = vunpack.c.l.bf16 %v179
    %v308 = vunpack.c.l.bf16 %v180
    %v309 = vunpack.c.l.bf16 %v181
    %v310 = vunpack.c.l.bf16 %v182
    %v311 = vunpack.c.l.bf16 %v183
    %v312 = vunpack.c.l.bf16 %v184
    %v313 = vunpack.c.l.bf16 %v185
    %v314 = vunpack.c.l.bf16 %v186
    %v315 = vunpack.c.l.bf16 %v187
    %v316 = vunpack.c.l.bf16 %v188
    %v317 = vunpack.c.l.bf16 %v189
    %v318 = vunpack.c.l.bf16 %v190
    %v319 = vunpack.c.l.bf16 %v191
    %v320 = vunpack.c.l.bf16 %v192
    %v321 = vunpack.c.l.bf16 %v193
    %v322 = vunpack.c.l.bf16 %v194
    %v323 = vunpack.c.l.bf16 %v195
    %v324 = vunpack.c.l.bf16 %v196
    %v325 = vunpack.c.l.bf16 %v197
    %v326 = vunpack.c.l.bf16 %v198
    %v327 = vunpack.c.l.bf16 %v199
    %v328 = vunpack.c.l.bf16 %v200
    %v329 = vunpack.c.l.bf16 %v201
    %v330 = vunpack.c.l.bf16 %v202
    %v331 = vunpack.c.l.bf16 %v203
    %v332 = vunpack.c.l.bf16 %v204
    %v333 = vunpack.c.l.bf16 %v205
    %v334 = vunpack.c.l.bf16 %v206
    %v335 = vunpack.c.l.bf16 %v207
    %v336 = vunpack.c.l.bf16 %v208
    %v337 = vunpack.c.l.bf16 %v209
    %v338 = vunpack.c.l.bf16 %v210
    %v339 = vunpack.c.l.bf16 %v211
    %v340 = vunpack.c.l.bf16 %v212
    %v341 = vunpack.c.l.bf16 %v213
    %v342 = vunpack.c.l.bf16 %v214
    %v343 = vunpack.c.l.bf16 %v215
    %v344 = vunpack.c.l.bf16 %v216
    %v345 = vunpack.c.l.bf16 %v217
    %v346 = vunpack.c.l.bf16 %v218
    %v347 = vunpack.c.l.bf16 %v219
    %v348 = vunpack.c.l.bf16 %v220
    %v349 = vunpack.c.l.bf16 %v221
    %v350 = vunpack.c.l.bf16 %v222
    %v351 = vunpack.c.l.bf16 %v223
    %v352 = vunpack.c.l.bf16 %v224
    %v353 = vunpack.c.l.bf16 %v225
    %v354 = vunpack.c.l.bf16 %v226
    %v355 = vunpack.c.l.bf16 %v227
    %v356 = vunpack.c.l.bf16 %v228
    %v357 = vunpack.c.l.bf16 %v229
    %v358 = vunpack.c.l.bf16 %v230
    %v359 = vunpack.c.l.bf16 %v231
    %v360 = vunpack.c.l.bf16 %v232
    %v361 = vunpack.c.l.bf16 %v233
    %v362 = vunpack.c.l.bf16 %v234
    %v363 = vunpack.c.l.bf16 %v235
    %v364 = vunpack.c.l.bf16 %v236
    %v365 = vunpack.c.l.bf16 %v237
    %v366 = vunpack.c.l.bf16 %v238
    %v367 = vunpack.c.l.bf16 %v239
    %v368 = vunpack.c.l.bf16 %v240
    %v369 = vunpack.c.l.bf16 %v241
    %v370 = vunpack.c.l.bf16 %v242
    %v371 = vunpack.c.l.bf16 %v243
    %v372 = vunpack.c.l.bf16 %v244
    %v373 = vunpack.c.l.bf16 %v245
    %v374 = vunpack.c.l.bf16 %v246
    %v375 = vunpack.c.l.bf16 %v247
    %v376 = vunpack.c.l.bf16 %v248
    %v377 = vunpack.c.l.bf16 %v249
    %v378 = vunpack.c.l.bf16 %v250
    %v379 = vunpack.c.l.bf16 %v251
    %v380 = vunpack.c.l.bf16 %v252
    %v381 = vld [vmem:[#allocation12] sm:$0xf]
    %v382 = vld [vmem:[#allocation12 + $0x4] sm:$0xf]
    %v383 = vld [vmem:[#allocation12 + $0x8] sm:$0xf]
    %v384 = vld [vmem:[#allocation12 + $0xc] sm:$0xf]
    %v385 = vld [vmem:[#allocation12 + $0x10] sm:$0xf]
    %v386 = vld [vmem:[#allocation12 + $0x14] sm:$0xf]
    %v387 = vld [vmem:[#allocation12 + $0x18] sm:$0xf]
    %v388 = vld [vmem:[#allocation12 + $0x1c] sm:$0xf]
    %v389 = vld [vmem:[#allocation12 + $0x20] sm:$0xf]
    %v390 = vld [vmem:[#allocation12 + $0x24] sm:$0xf]
    %v391 = vld [vmem:[#allocation12 + $0x28] sm:$0xf]
    %v392 = vld [vmem:[#allocation12 + $0x2c] sm:$0xf]
    %v393 = vld [vmem:[#allocation12 + $0x30] sm:$0xf]
    %v394 = vld [vmem:[#allocation12 + $0x34] sm:$0xf]
    %v395 = vld [vmem:[#allocation12 + $0x38] sm:$0xf]
    %v396 = vld [vmem:[#allocation12 + $0x3c] sm:$0xf]
    %v397 = vld [vmem:[#allocation12 + $0x40] sm:$0xf]
    %v398 = vld [vmem:[#allocation12 + $0x44] sm:$0xf]
    %v399 = vld [vmem:[#allocation12 + $0x48] sm:$0xf]
    %v400 = vld [vmem:[#allocation12 + $0x4c] sm:$0xf]
    %v401 = vld [vmem:[#allocation12 + $0x50] sm:$0xf]
    %v402 = vld [vmem:[#allocation12 + $0x54] sm:$0xf]
    %v403 = vld [vmem:[#allocation12 + $0x58] sm:$0xf]
    %v404 = vld [vmem:[#allocation12 + $0x5c] sm:$0xf]
    %v405 = vld [vmem:[#allocation12 + $0x60] sm:$0xf]
    %v406 = vld [vmem:[#allocation12 + $0x64] sm:$0xf]
    %v407 = vld [vmem:[#allocation12 + $0x68] sm:$0xf]
    %v408 = vld [vmem:[#allocation12 + $0x6c] sm:$0xf]
    %v409 = vld [vmem:[#allocation12 + $0x70] sm:$0xf]
    %v410 = vld [vmem:[#allocation12 + $0x74] sm:$0xf]
    %v411 = vld [vmem:[#allocation12 + $0x78] sm:$0xf]
    %v412 = vld [vmem:[#allocation12 + $0x7c] sm:$0xf]
    %v413 = vld [vmem:[#allocation12 + $0x80] sm:$0xf]
    %v414 = vld [vmem:[#allocation12 + $0x84] sm:$0xf]
    %v415 = vld [vmem:[#allocation12 + $0x88] sm:$0xf]
    %v416 = vld [vmem:[#allocation12 + $0x8c] sm:$0xf]
    %v417 = vld [vmem:[#allocation12 + $0x90] sm:$0xf]
    %v418 = vld [vmem:[#allocation12 + $0x94] sm:$0xf]
    %v419 = vld [vmem:[#allocation12 + $0x98] sm:$0xf]
    %v420 = vld [vmem:[#allocation12 + $0x9c] sm:$0xf]
    %v421 = vld [vmem:[#allocation12 + $0xa0] sm:$0xf]
    %v422 = vld [vmem:[#allocation12 + $0xa4] sm:$0xf]
    %v423 = vld [vmem:[#allocation12 + $0xa8] sm:$0xf]
    %v424 = vld [vmem:[#allocation12 + $0xac] sm:$0xf]
    %v425 = vld [vmem:[#allocation12 + $0xb0] sm:$0xf]
    %v426 = vld [vmem:[#allocation12 + $0xb4] sm:$0xf]
    %v427 = vld [vmem:[#allocation12 + $0xb8] sm:$0xf]
    %v428 = vld [vmem:[#allocation12 + $0xbc] sm:$0xf]
    %v429 = vld [vmem:[#allocation12 + $0xc0] sm:$0xf]
    %v430 = vld [vmem:[#allocation12 + $0xc4] sm:$0xf]
    %v431 = vld [vmem:[#allocation12 + $0xc8] sm:$0xf]
    %v432 = vld [vmem:[#allocation12 + $0xcc] sm:$0xf]
    %v433 = vld [vmem:[#allocation12 + $0xd0] sm:$0xf]
    %v434 = vld [vmem:[#allocation12 + $0xd4] sm:$0xf]
    %v435 = vld [vmem:[#allocation12 + $0xd8] sm:$0xf]
    %v436 = vld [vmem:[#allocation12 + $0xdc] sm:$0xf]
    %v437 = vld [vmem:[#allocation12 + $0xe0] sm:$0xf]
    %v438 = vld [vmem:[#allocation12 + $0xe4] sm:$0xf]
    %v439 = vld [vmem:[#allocation12 + $0xe8] sm:$0xf]
    %v440 = vld [vmem:[#allocation12 + $0xec] sm:$0xf]
    %v441 = vld [vmem:[#allocation12 + $0xf0] sm:$0xf]
    %v442 = vld [vmem:[#allocation12 + $0xf4] sm:$0xf]
    %v443 = vld [vmem:[#allocation12 + $0xf8] sm:$0xf]
    %v444 = vld [vmem:[#allocation12 + $0xfc] sm:$0xf]
    %v445 = vld [vmem:[#allocation12 + $0x100] sm:$0xf]
    %v446 = vld [vmem:[#allocation12 + $0x104] sm:$0xf]
    %v447 = vld [vmem:[#allocation12 + $0x108] sm:$0xf]
    %v448 = vld [vmem:[#allocation12 + $0x10c] sm:$0xf]
    %v449 = vld [vmem:[#allocation12 + $0x110] sm:$0xf]
    %v450 = vld [vmem:[#allocation12 + $0x114] sm:$0xf]
    %v451 = vld [vmem:[#allocation12 + $0x118] sm:$0xf]
    %v452 = vld [vmem:[#allocation12 + $0x11c] sm:$0xf]
    %v453 = vld [vmem:[#allocation12 + $0x120] sm:$0xf]
    %v454 = vld [vmem:[#allocation12 + $0x124] sm:$0xf]
    %v455 = vld [vmem:[#allocation12 + $0x128] sm:$0xf]
    %v456 = vld [vmem:[#allocation12 + $0x12c] sm:$0xf]
    %v457 = vld [vmem:[#allocation12 + $0x130] sm:$0xf]
    %v458 = vld [vmem:[#allocation12 + $0x134] sm:$0xf]
    %v459 = vld [vmem:[#allocation12 + $0x138] sm:$0xf]
    %v460 = vld [vmem:[#allocation12 + $0x13c] sm:$0xf]
    %v461 = vld [vmem:[#allocation12 + $0x140] sm:$0xf]
    %v462 = vld [vmem:[#allocation12 + $0x144] sm:$0xf]
    %v463 = vld [vmem:[#allocation12 + $0x148] sm:$0xf]
    %v464 = vld [vmem:[#allocation12 + $0x14c] sm:$0xf]
    %v465 = vld [vmem:[#allocation12 + $0x150] sm:$0xf]
    %v466 = vld [vmem:[#allocation12 + $0x154] sm:$0xf]
    %v467 = vld [vmem:[#allocation12 + $0x158] sm:$0xf]
    %v468 = vld [vmem:[#allocation12 + $0x15c] sm:$0xf]
    %v469 = vld [vmem:[#allocation12 + $0x160] sm:$0xf]
    %v470 = vld [vmem:[#allocation12 + $0x164] sm:$0xf]
    %v471 = vld [vmem:[#allocation12 + $0x168] sm:$0xf]
    %v472 = vld [vmem:[#allocation12 + $0x16c] sm:$0xf]
    %v473 = vld [vmem:[#allocation12 + $0x170] sm:$0xf]
    %v474 = vld [vmem:[#allocation12 + $0x174] sm:$0xf]
    %v475 = vld [vmem:[#allocation12 + $0x178] sm:$0xf]
    %v476 = vld [vmem:[#allocation12 + $0x17c] sm:$0xf]
    %v477 = vld [vmem:[#allocation12 + $0x180] sm:$0xf]
    %v478 = vld [vmem:[#allocation12 + $0x184] sm:$0xf]
    %v479 = vld [vmem:[#allocation12 + $0x188] sm:$0xf]
    %v480 = vld [vmem:[#allocation12 + $0x18c] sm:$0xf]
    %v481 = vld [vmem:[#allocation12 + $0x190] sm:$0xf]
    %v482 = vld [vmem:[#allocation12 + $0x194] sm:$0xf]
    %v483 = vld [vmem:[#allocation12 + $0x198] sm:$0xf]
    %v484 = vld [vmem:[#allocation12 + $0x19c] sm:$0xf]
    %v485 = vld [vmem:[#allocation12 + $0x1a0] sm:$0xf]
    %v486 = vld [vmem:[#allocation12 + $0x1a4] sm:$0xf]
    %v487 = vld [vmem:[#allocation12 + $0x1a8] sm:$0xf]
    %v488 = vld [vmem:[#allocation12 + $0x1ac] sm:$0xf]
    %v489 = vld [vmem:[#allocation12 + $0x1b0] sm:$0xf]
    %v490 = vld [vmem:[#allocation12 + $0x1b4] sm:$0xf]
    %v491 = vld [vmem:[#allocation12 + $0x1b8] sm:$0xf]
    %v492 = vld [vmem:[#allocation12 + $0x1bc] sm:$0xf]
    %v493 = vld [vmem:[#allocation12 + $0x1c0] sm:$0xf]
    %v494 = vld [vmem:[#allocation12 + $0x1c4] sm:$0xf]
    %v495 = vld [vmem:[#allocation12 + $0x1c8] sm:$0xf]
    %v496 = vld [vmem:[#allocation12 + $0x1cc] sm:$0xf]
    %v497 = vld [vmem:[#allocation12 + $0x1d0] sm:$0xf]
    %v498 = vld [vmem:[#allocation12 + $0x1d4] sm:$0xf]
    %v499 = vld [vmem:[#allocation12 + $0x1d8] sm:$0xf]
    %v500 = vld [vmem:[#allocation12 + $0x1dc] sm:$0xf]
    %v501 = vld [vmem:[#allocation12 + $0x1e0] sm:$0xf]
    %v502 = vld [vmem:[#allocation12 + $0x1e4] sm:$0xf]
    %v503 = vld [vmem:[#allocation12 + $0x1e8] sm:$0xf]
    %v504 = vld [vmem:[#allocation12 + $0x1ec] sm:$0xf]
    %v505 = vld [vmem:[#allocation12 + $0x1f0] sm:$0xf]
    %v506 = vld [vmem:[#allocation12 + $0x1f4] sm:$0xf]
    %v507 = vld [vmem:[#allocation12 + $0x1f8] sm:$0xf]
    %v508 = vld [vmem:[#allocation12 + $0x1fc] sm:$0xf]
    %v509 = vunpack.c.l.bf16 %v381
    %v510 = vunpack.c.l.bf16 %v382
    %v511 = vunpack.c.l.bf16 %v383
    %v512 = vunpack.c.l.bf16 %v384
    %v513 = vunpack.c.l.bf16 %v385
    %v514 = vunpack.c.l.bf16 %v386
    %v515 = vunpack.c.l.bf16 %v387
    %v516 = vunpack.c.l.bf16 %v388
    %v517 = vunpack.c.l.bf16 %v389
    %v518 = vunpack.c.l.bf16 %v390
    %v519 = vunpack.c.l.bf16 %v391
    %v520 = vunpack.c.l.bf16 %v392
    %v521 = vunpack.c.l.bf16 %v393
    %v522 = vunpack.c.l.bf16 %v394
    %v523 = vunpack.c.l.bf16 %v395
    %v524 = vunpack.c.l.bf16 %v396
    %v525 = vunpack.c.l.bf16 %v397
    %v526 = vunpack.c.l.bf16 %v398
    %v527 = vunpack.c.l.bf16 %v399
    %v528 = vunpack.c.l.bf16 %v400
    %v529 = vunpack.c.l.bf16 %v401
    %v530 = vunpack.c.l.bf16 %v402
    %v531 = vunpack.c.l.bf16 %v403
    %v532 = vunpack.c.l.bf16 %v404
    %v533 = vunpack.c.l.bf16 %v405
    %v534 = vunpack.c.l.bf16 %v406
    %v535 = vunpack.c.l.bf16 %v407
    %v536 = vunpack.c.l.bf16 %v408
    %v537 = vunpack.c.l.bf16 %v409
    %v538 = vunpack.c.l.bf16 %v410
    %v539 = vunpack.c.l.bf16 %v411
    %v540 = vunpack.c.l.bf16 %v412
    %v541 = vunpack.c.l.bf16 %v413
    %v542 = vunpack.c.l.bf16 %v414
    %v543 = vunpack.c.l.bf16 %v415
    %v544 = vunpack.c.l.bf16 %v416
    %v545 = vunpack.c.l.bf16 %v417
    %v546 = vunpack.c.l.bf16 %v418
    %v547 = vunpack.c.l.bf16 %v419
    %v548 = vunpack.c.l.bf16 %v420
    %v549 = vunpack.c.l.bf16 %v421
    %v550 = vunpack.c.l.bf16 %v422
    %v551 = vunpack.c.l.bf16 %v423
    %v552 = vunpack.c.l.bf16 %v424
    %v553 = vunpack.c.l.bf16 %v425
    %v554 = vunpack.c.l.bf16 %v426
    %v555 = vunpack.c.l.bf16 %v427
    %v556 = vunpack.c.l.bf16 %v428
    %v557 = vunpack.c.l.bf16 %v429
    %v558 = vunpack.c.l.bf16 %v430
    %v559 = vunpack.c.l.bf16 %v431
    %v560 = vunpack.c.l.bf16 %v432
    %v561 = vunpack.c.l.bf16 %v433
    %v562 = vunpack.c.l.bf16 %v434
    %v563 = vunpack.c.l.bf16 %v435
    %v564 = vunpack.c.l.bf16 %v436
    %v565 = vunpack.c.l.bf16 %v437
    %v566 = vunpack.c.l.bf16 %v438
    %v567 = vunpack.c.l.bf16 %v439
    %v568 = vunpack.c.l.bf16 %v440
    %v569 = vunpack.c.l.bf16 %v441
    %v570 = vunpack.c.l.bf16 %v442
    %v571 = vunpack.c.l.bf16 %v443
    %v572 = vunpack.c.l.bf16 %v444
    %v573 = vunpack.c.l.bf16 %v445
    %v574 = vunpack.c.l.bf16 %v446
    %v575 = vunpack.c.l.bf16 %v447
    %v576 = vunpack.c.l.bf16 %v448
    %v577 = vunpack.c.l.bf16 %v449
    %v578 = vunpack.c.l.bf16 %v450
    %v579 = vunpack.c.l.bf16 %v451
    %v580 = vunpack.c.l.bf16 %v452
    %v581 = vunpack.c.l.bf16 %v453
    %v582 = vunpack.c.l.bf16 %v454
    %v583 = vunpack.c.l.bf16 %v455
    %v584 = vunpack.c.l.bf16 %v456
    %v585 = vunpack.c.l.bf16 %v457
    %v586 = vunpack.c.l.bf16 %v458
    %v587 = vunpack.c.l.bf16 %v459
    %v588 = vunpack.c.l.bf16 %v460
    %v589 = vunpack.c.l.bf16 %v461
    %v590 = vunpack.c.l.bf16 %v462
    %v591 = vunpack.c.l.bf16 %v463
    %v592 = vunpack.c.l.bf16 %v464
    %v593 = vunpack.c.l.bf16 %v465
    %v594 = vunpack.c.l.bf16 %v466
    %v595 = vunpack.c.l.bf16 %v467
    %v596 = vunpack.c.l.bf16 %v468
    %v597 = vunpack.c.l.bf16 %v469
    %v598 = vunpack.c.l.bf16 %v470
    %v599 = vunpack.c.l.bf16 %v471
    %v600 = vunpack.c.l.bf16 %v472
    %v601 = vunpack.c.l.bf16 %v473
    %v602 = vunpack.c.l.bf16 %v474
    %v603 = vunpack.c.l.bf16 %v475
    %v604 = vunpack.c.l.bf16 %v476
    %v605 = vunpack.c.l.bf16 %v477
    %v606 = vunpack.c.l.bf16 %v478
    %v607 = vunpack.c.l.bf16 %v479
    %v608 = vunpack.c.l.bf16 %v480
    %v609 = vunpack.c.l.bf16 %v481
    %v610 = vunpack.c.l.bf16 %v482
    %v611 = vunpack.c.l.bf16 %v483
    %v612 = vunpack.c.l.bf16 %v484
    %v613 = vunpack.c.l.bf16 %v485
    %v614 = vunpack.c.l.bf16 %v486
    %v615 = vunpack.c.l.bf16 %v487
    %v616 = vunpack.c.l.bf16 %v488
    %v617 = vunpack.c.l.bf16 %v489
    %v618 = vunpack.c.l.bf16 %v490
    %v619 = vunpack.c.l.bf16 %v491
    %v620 = vunpack.c.l.bf16 %v492
    %v621 = vunpack.c.l.bf16 %v493
    %v622 = vunpack.c.l.bf16 %v494
    %v623 = vunpack.c.l.bf16 %v495
    %v624 = vunpack.c.l.bf16 %v496
    %v625 = vunpack.c.l.bf16 %v497
    %v626 = vunpack.c.l.bf16 %v498
    %v627 = vunpack.c.l.bf16 %v499
    %v628 = vunpack.c.l.bf16 %v500
    %v629 = vunpack.c.l.bf16 %v501
    %v630 = vunpack.c.l.bf16 %v502
    %v631 = vunpack.c.l.bf16 %v503
    %v632 = vunpack.c.l.bf16 %v504
    %v633 = vunpack.c.l.bf16 %v505
    %v634 = vunpack.c.l.bf16 %v506
    %v635 = vunpack.c.l.bf16 %v507
    %v636 = vunpack.c.l.bf16 %v508
    %v637 = vld [vmem:[#allocation3] sm:$0xff]
    %v638 = vld [vmem:[#allocation3 + $0x8] sm:$0xff]
    %v639 = vld [vmem:[#allocation2] sm:$0x3]
    %v642 = vcombine.high %v637, %v637
    %v644 = vunpack.c.l.s4 1983009808
    %v645 = vunpack.c.0.s8 %v644
    %v646 = vlaneseq
    %v647 = vshrl.u32 %v646, 7
    %v648 = vsub.s32 %v645, %v647
    %v649 = vrot.slane %v637, %v648
    %v651 = vunpack.c.l.s4 1983009808
    %v652 = vunpack.c.0.s8 %v651
    %v653 = vlaneseq
    %v654 = vshrl.u32 %v653, 7
    %v655 = vsub.s32 %v652, %v654
    %v656 = vrot.slane %v642, %v655
    %v657 = vcombine.high %v649, %v649
    %v658 = vcombine.high %v656, %v656
    %v659 = vcombine.high %v638, %v638
    %v661 = vunpack.c.l.s4 1983009808
    %v662 = vunpack.c.0.s8 %v661
    %v663 = vlaneseq
    %v664 = vshrl.u32 %v663, 7
    %v665 = vsub.s32 %v662, %v664
    %v666 = vrot.slane %v638, %v665
    %v668 = vunpack.c.l.s4 1983009808
    %v669 = vunpack.c.0.s8 %v668
    %v670 = vlaneseq
    %v671 = vshrl.u32 %v670, 7
    %v672 = vsub.s32 %v669, %v671
    %v673 = vrot.slane %v659, %v672
    %v674 = vcombine.high %v666, %v666
    %v675 = vcombine.high %v673, %v673
    %684 = vmatprep.subr.mxu0 0.0
    %685 = vmatpush1.msra.mxu0 %v253
    %686 = vmatprep.subr.mxu0 0.0
    %687 = vmatpush1.msra.mxu0 %v254
    %688 = vmatprep.subr.mxu0 0.0
    %689 = vmatpush1.msra.mxu0 %v255
    %690 = vmatprep.subr.mxu0 0.0
    %691 = vmatpush1.msra.mxu0 %v256
    %692 = vmatprep.subr.mxu0 0.0
    %693 = vmatpush1.msra.mxu0 %v257
    %694 = vmatprep.subr.mxu0 0.0
    %695 = vmatpush1.msra.mxu0 %v258
    %696 = vmatprep.subr.mxu0 0.0
    %697 = vmatpush1.msra.mxu0 %v259
    %698 = vmatprep.subr.mxu0 0.0
    %699 = vmatpush1.msra.mxu0 %v260
    %700 = vmatprep.subr.mxu0 0.0
    %701 = vmatpush1.msra.mxu0 %v261
    %702 = vmatprep.subr.mxu0 0.0
    %703 = vmatpush1.msra.mxu0 %v262
    %704 = vmatprep.subr.mxu0 0.0
    %705 = vmatpush1.msra.mxu0 %v263
    %706 = vmatprep.subr.mxu0 0.0
    %707 = vmatpush1.msra.mxu0 %v264
    %708 = vmatprep.subr.mxu0 0.0
    %709 = vmatpush1.msra.mxu0 %v265
    %710 = vmatprep.subr.mxu0 0.0
    %711 = vmatpush1.msra.mxu0 %v266
    %712 = vmatprep.subr.mxu0 0.0
    %713 = vmatpush1.msra.mxu0 %v267
    %714 = vmatprep.subr.mxu0 0.0
    %715 = vmatpush1.msra.mxu0 %v268
    %716 = vmatprep.subr.mxu0 0.0
    %717 = vmatpush1.msra.mxu0 %v269
    %718 = vmatprep.subr.mxu0 0.0
    %719 = vmatpush1.msra.mxu0 %v270
    %720 = vmatprep.subr.mxu0 0.0
    %721 = vmatpush1.msra.mxu0 %v271
    %722 = vmatprep.subr.mxu0 0.0
    %723 = vmatpush1.msra.mxu0 %v272
    %724 = vmatprep.subr.mxu0 0.0
    %725 = vmatpush1.msra.mxu0 %v273
    %726 = vmatprep.subr.mxu0 0.0
    %727 = vmatpush1.msra.mxu0 %v274
    %728 = vmatprep.subr.mxu0 0.0
    %729 = vmatpush1.msra.mxu0 %v275
    %730 = vmatprep.subr.mxu0 0.0
    %731 = vmatpush1.msra.mxu0 %v276
    %732 = vmatprep.subr.mxu0 0.0
    %733 = vmatpush1.msra.mxu0 %v277
    %734 = vmatprep.subr.mxu0 0.0
    %735 = vmatpush1.msra.mxu0 %v278
    %736 = vmatprep.subr.mxu0 0.0
    %737 = vmatpush1.msra.mxu0 %v279
    %738 = vmatprep.subr.mxu0 0.0
    %739 = vmatpush1.msra.mxu0 %v280
    %740 = vmatprep.subr.mxu0 0.0
    %741 = vmatpush1.msra.mxu0 %v281
    %742 = vmatprep.subr.mxu0 0.0
    %743 = vmatpush1.msra.mxu0 %v282
    %744 = vmatprep.subr.mxu0 0.0
    %745 = vmatpush1.msra.mxu0 %v283
    %746 = vmatprep.subr.mxu0 0.0
    %747 = vmatpush1.msra.mxu0 %v284
    %748 = vmatprep.mubr.f32.mxu0 %v657
    %749 = vmatmul.mubr.f32.gmra.mrb[0].mxu0 %v649
    %v750 = vpop.f32.mrb[0].mxu0
    %v751 = vadd.f32 0.0, %v750
    %v752 = vpop.f32.mrb[0].mxu0
    %753 = vdwg.mxu0
    %754 = vmatprep.subr.mxu0 0.0
    %755 = vmatpush1.msra.mxu0 %v285
    %756 = vmatprep.subr.mxu0 0.0
    %757 = vmatpush1.msra.mxu0 %v286
    %758 = vmatprep.subr.mxu0 0.0
    %759 = vmatpush1.msra.mxu0 %v287
    %760 = vmatprep.subr.mxu0 0.0
    %761 = vmatpush1.msra.mxu0 %v288
    %762 = vmatprep.subr.mxu0 0.0
    %763 = vmatpush1.msra.mxu0 %v289
    %764 = vmatprep.subr.mxu0 0.0
    %765 = vmatpush1.msra.mxu0 %v290
    %766 = vmatprep.subr.mxu0 0.0
    %767 = vmatpush1.msra.mxu0 %v291
    %768 = vmatprep.subr.mxu0 0.0
    %769 = vmatpush1.msra.mxu0 %v292
    %770 = vmatprep.subr.mxu0 0.0
    %771 = vmatpush1.msra.mxu0 %v293
    %772 = vmatprep.subr.mxu0 0.0
    %773 = vmatpush1.msra.mxu0 %v294
    %774 = vmatprep.subr.mxu0 0.0
    %775 = vmatpush1.msra.mxu0 %v295
    %776 = vmatprep.subr.mxu0 0.0
    %777 = vmatpush1.msra.mxu0 %v296
    %778 = vmatprep.subr.mxu0 0.0
    %779 = vmatpush1.msra.mxu0 %v297
    %780 = vmatprep.subr.mxu0 0.0
    %781 = vmatpush1.msra.mxu0 %v298
    %782 = vmatprep.subr.mxu0 0.0
    %783 = vmatpush1.msra.mxu0 %v299
    %784 = vmatprep.subr.mxu0 0.0
    %785 = vmatpush1.msra.mxu0 %v300
    %786 = vmatprep.subr.mxu0 0.0
    %787 = vmatpush1.msra.mxu0 %v301
    %788 = vmatprep.subr.mxu0 0.0
    %789 = vmatpush1.msra.mxu0 %v302
    %790 = vmatprep.subr.mxu0 0.0
    %791 = vmatpush1.msra.mxu0 %v303
    %792 = vmatprep.subr.mxu0 0.0
    %793 = vmatpush1.msra.mxu0 %v304
    %794 = vmatprep.subr.mxu0 0.0
    %795 = vmatpush1.msra.mxu0 %v305
    %796 = vmatprep.subr.mxu0 0.0
    %797 = vmatpush1.msra.mxu0 %v306
    %798 = vmatprep.subr.mxu0 0.0
    %799 = vmatpush1.msra.mxu0 %v307
    %800 = vmatprep.subr.mxu0 0.0
    %801 = vmatpush1.msra.mxu0 %v308
    %802 = vmatprep.subr.mxu0 0.0
    %803 = vmatpush1.msra.mxu0 %v309
    %804 = vmatprep.subr.mxu0 0.0
    %805 = vmatpush1.msra.mxu0 %v310
    %806 = vmatprep.subr.mxu0 0.0
    %807 = vmatpush1.msra.mxu0 %v311
    %808 = vmatprep.subr.mxu0 0.0
    %809 = vmatpush1.msra.mxu0 %v312
    %810 = vmatprep.subr.mxu0 0.0
    %811 = vmatpush1.msra.mxu0 %v313
    %812 = vmatprep.subr.mxu0 0.0
    %813 = vmatpush1.msra.mxu0 %v314
    %814 = vmatprep.subr.mxu0 0.0
    %815 = vmatpush1.msra.mxu0 %v315
    %816 = vmatprep.subr.mxu0 0.0
    %817 = vmatpush1.msra.mxu0 %v316
    %818 = vmatprep.mubr.f32.mxu0 %v658
    %819 = vmatmul.mubr.f32.gmra.mrb[0].mxu0 %v656
    %v820 = vpop.f32.mrb[0].mxu0
    %v821 = vadd.f32 %v751, %v820
    %v822 = vpop.f32.mrb[0].mxu0
    %823 = vdwg.mxu0
    %824 = vmatprep.subr.mxu0 0.0
    %825 = vmatpush1.msra.mxu0 %v317
    %826 = vmatprep.subr.mxu0 0.0
    %827 = vmatpush1.msra.mxu0 %v318
    %828 = vmatprep.subr.mxu0 0.0
    %829 = vmatpush1.msra.mxu0 %v319
    %830 = vmatprep.subr.mxu0 0.0
    %831 = vmatpush1.msra.mxu0 %v320
    %832 = vmatprep.subr.mxu0 0.0
    %833 = vmatpush1.msra.mxu0 %v321
    %834 = vmatprep.subr.mxu0 0.0
    %835 = vmatpush1.msra.mxu0 %v322
    %836 = vmatprep.subr.mxu0 0.0
    %837 = vmatpush1.msra.mxu0 %v323
    %838 = vmatprep.subr.mxu0 0.0
    %839 = vmatpush1.msra.mxu0 %v324
    %840 = vmatprep.subr.mxu0 0.0
    %841 = vmatpush1.msra.mxu0 %v325
    %842 = vmatprep.subr.mxu0 0.0
    %843 = vmatpush1.msra.mxu0 %v326
    %844 = vmatprep.subr.mxu0 0.0
    %845 = vmatpush1.msra.mxu0 %v327
    %846 = vmatprep.subr.mxu0 0.0
    %847 = vmatpush1.msra.mxu0 %v328
    %848 = vmatprep.subr.mxu0 0.0
    %849 = vmatpush1.msra.mxu0 %v329
    %850 = vmatprep.subr.mxu0 0.0
    %851 = vmatpush1.msra.mxu0 %v330
    %852 = vmatprep.subr.mxu0 0.0
    %853 = vmatpush1.msra.mxu0 %v331
    %854 = vmatprep.subr.mxu0 0.0
    %855 = vmatpush1.msra.mxu0 %v332
    %856 = vmatprep.subr.mxu0 0.0
    %857 = vmatpush1.msra.mxu0 %v333
    %858 = vmatprep.subr.mxu0 0.0
    %859 = vmatpush1.msra.mxu0 %v334
    %860 = vmatprep.subr.mxu0 0.0
    %861 = vmatpush1.msra.mxu0 %v335
    %862 = vmatprep.subr.mxu0 0.0
    %863 = vmatpush1.msra.mxu0 %v336
    %864 = vmatprep.subr.mxu0 0.0
    %865 = vmatpush1.msra.mxu0 %v337
    %866 = vmatprep.subr.mxu0 0.0
    %867 = vmatpush1.msra.mxu0 %v338
    %868 = vmatprep.subr.mxu0 0.0
    %869 = vmatpush1.msra.mxu0 %v339
    %870 = vmatprep.subr.mxu0 0.0
    %871 = vmatpush1.msra.mxu0 %v340
    %872 = vmatprep.subr.mxu0 0.0
    %873 = vmatpush1.msra.mxu0 %v341
    %874 = vmatprep.subr.mxu0 0.0
    %875 = vmatpush1.msra.mxu0 %v342
    %876 = vmatprep.subr.mxu0 0.0
    %877 = vmatpush1.msra.mxu0 %v343
    %878 = vmatprep.subr.mxu0 0.0
    %879 = vmatpush1.msra.mxu0 %v344
    %880 = vmatprep.subr.mxu0 0.0
    %881 = vmatpush1.msra.mxu0 %v345
    %882 = vmatprep.subr.mxu0 0.0
    %883 = vmatpush1.msra.mxu0 %v346
    %884 = vmatprep.subr.mxu0 0.0
    %885 = vmatpush1.msra.mxu0 %v347
    %886 = vmatprep.subr.mxu0 0.0
    %887 = vmatpush1.msra.mxu0 %v348
    %888 = vmatprep.mubr.f32.mxu0 %v674
    %889 = vmatmul.mubr.f32.gmra.mrb[0].mxu0 %v666
    %v890 = vpop.f32.mrb[0].mxu0
    %v891 = vadd.f32 %v821, %v890
    %v892 = vpop.f32.mrb[0].mxu0
    %893 = vdwg.mxu0
    %894 = vmatprep.subr.mxu0 0.0
    %895 = vmatpush1.msra.mxu0 %v349
    %896 = vmatprep.subr.mxu0 0.0
    %897 = vmatpush1.msra.mxu0 %v350
    %898 = vmatprep.subr.mxu0 0.0
    %899 = vmatpush1.msra.mxu0 %v351
    %900 = vmatprep.subr.mxu0 0.0
    %901 = vmatpush1.msra.mxu0 %v352
    %902 = vmatprep.subr.mxu0 0.0
    %903 = vmatpush1.msra.mxu0 %v353
    %904 = vmatprep.subr.mxu0 0.0
    %905 = vmatpush1.msra.mxu0 %v354
    %906 = vmatprep.subr.mxu0 0.0
    %907 = vmatpush1.msra.mxu0 %v355
    %908 = vmatprep.subr.mxu0 0.0
    %909 = vmatpush1.msra.mxu0 %v356
    %910 = vmatprep.subr.mxu0 0.0
    %911 = vmatpush1.msra.mxu0 %v357
    %912 = vmatprep.subr.mxu0 0.0
    %913 = vmatpush1.msra.mxu0 %v358
    %914 = vmatprep.subr.mxu0 0.0
    %915 = vmatpush1.msra.mxu0 %v359
    %916 = vmatprep.subr.mxu0 0.0
    %917 = vmatpush1.msra.mxu0 %v360
    %918 = vmatprep.subr.mxu0 0.0
    %919 = vmatpush1.msra.mxu0 %v361
    %920 = vmatprep.subr.mxu0 0.0
    %921 = vmatpush1.msra.mxu0 %v362
    %922 = vmatprep.subr.mxu0 0.0
    %923 = vmatpush1.msra.mxu0 %v363
    %924 = vmatprep.subr.mxu0 0.0
    %925 = vmatpush1.msra.mxu0 %v364
    %926 = vmatprep.subr.mxu0 0.0
    %927 = vmatpush1.msra.mxu0 %v365
    %928 = vmatprep.subr.mxu0 0.0
    %929 = vmatpush1.msra.mxu0 %v366
    %930 = vmatprep.subr.mxu0 0.0
    %931 = vmatpush1.msra.mxu0 %v367
    %932 = vmatprep.subr.mxu0 0.0
    %933 = vmatpush1.msra.mxu0 %v368
    %934 = vmatprep.subr.mxu0 0.0
    %935 = vmatpush1.msra.mxu0 %v369
    %936 = vmatprep.subr.mxu0 0.0
    %937 = vmatpush1.msra.mxu0 %v370
    %938 = vmatprep.subr.mxu0 0.0
    %939 = vmatpush1.msra.mxu0 %v371
    %940 = vmatprep.subr.mxu0 0.0
    %941 = vmatpush1.msra.mxu0 %v372
    %942 = vmatprep.subr.mxu0 0.0
    %943 = vmatpush1.msra.mxu0 %v373
    %944 = vmatprep.subr.mxu0 0.0
    %945 = vmatpush1.msra.mxu0 %v374
    %946 = vmatprep.subr.mxu0 0.0
    %947 = vmatpush1.msra.mxu0 %v375
    %948 = vmatprep.subr.mxu0 0.0
    %949 = vmatpush1.msra.mxu0 %v376
    %950 = vmatprep.subr.mxu0 0.0
    %951 = vmatpush1.msra.mxu0 %v377
    %952 = vmatprep.subr.mxu0 0.0
    %953 = vmatpush1.msra.mxu0 %v378
    %954 = vmatprep.subr.mxu0 0.0
    %955 = vmatpush1.msra.mxu0 %v379
    %956 = vmatprep.subr.mxu0 0.0
    %957 = vmatpush1.msra.mxu0 %v380
    %958 = vmatprep.mubr.f32.mxu0 %v675
    %959 = vmatmul.mubr.f32.gmra.mrb[0].mxu0 %v673
    %v960 = vpop.f32.mrb[0].mxu0
    %v961 = vadd.f32 %v891, %v960
    %v962 = vpop.f32.mrb[0].mxu0
    %963 = vdwg.mxu0
    %v964 = vadd.f32 %v639, %v961
    %965 = vst [vmem:[#allocation2] sm:$0x3] %v964
    %v966 = vld [vmem:[#allocation6] sm:$0xff]
    %v967 = vld [vmem:[#allocation6 + $0x8] sm:$0xff]
    %v968 = vld [vmem:[#allocation2 + $0x2] sm:$0x3]
    %v971 = vcombine.high %v966, %v966
    %v973 = vunpack.c.l.s4 1983009808
    %v974 = vunpack.c.0.s8 %v973
    %v975 = vlaneseq
    %v976 = vshrl.u32 %v975, 7
    %v977 = vsub.s32 %v974, %v976
    %v978 = vrot.slane %v966, %v977
    %v980 = vunpack.c.l.s4 1983009808
    %v981 = vunpack.c.0.s8 %v980
    %v982 = vlaneseq
    %v983 = vshrl.u32 %v982, 7
    %v984 = vsub.s32 %v981, %v983
    %v985 = vrot.slane %v971, %v984
    %v986 = vcombine.high %v978, %v978
    %v987 = vcombine.high %v985, %v985
    %v988 = vcombine.high %v967, %v967
    %v990 = vunpack.c.l.s4 1983009808
    %v991 = vunpack.c.0.s8 %v990
    %v992 = vlaneseq
    %v993 = vshrl.u32 %v992, 7
    %v994 = vsub.s32 %v991, %v993
    %v995 = vrot.slane %v967, %v994
    %v997 = vunpack.c.l.s4 1983009808
    %v998 = vunpack.c.0.s8 %v997
    %v999 = vlaneseq
    %v1000 = vshrl.u32 %v999, 7
    %v1001 = vsub.s32 %v998, %v1000
    %v1002 = vrot.slane %v988, %v1001
    %v1003 = vcombine.high %v995, %v995
    %v1004 = vcombine.high %v1002, %v1002
    %1013 = vmatprep.subr.mxu0 0.0
    %1014 = vmatpush1.msra.mxu0 %v509
    %1015 = vmatprep.subr.mxu0 0.0
    %1016 = vmatpush1.msra.mxu0 %v510
    %1017 = vmatprep.subr.mxu0 0.0
    %1018 = vmatpush1.msra.mxu0 %v511
    %1019 = vmatprep.subr.mxu0 0.0
    %1020 = vmatpush1.msra.mxu0 %v512
    %1021 = vmatprep.subr.mxu0 0.0
    %1022 = vmatpush1.msra.mxu0 %v513
    %1023 = vmatprep.subr.mxu0 0.0
    %1024 = vmatpush1.msra.mxu0 %v514
    %1025 = vmatprep.subr.mxu0 0.0
    %1026 = vmatpush1.msra.mxu0 %v515
    %1027 = vmatprep.subr.mxu0 0.0
    %1028 = vmatpush1.msra.mxu0 %v516
    %1029 = vmatprep.subr.mxu0 0.0
    %1030 = vmatpush1.msra.mxu0 %v517
    %1031 = vmatprep.subr.mxu0 0.0
    %1032 = vmatpush1.msra.mxu0 %v518
    %1033 = vmatprep.subr.mxu0 0.0
    %1034 = vmatpush1.msra.mxu0 %v519
    %1035 = vmatprep.subr.mxu0 0.0
    %1036 = vmatpush1.msra.mxu0 %v520
    %1037 = vmatprep.subr.mxu0 0.0
    %1038 = vmatpush1.msra.mxu0 %v521
    %1039 = vmatprep.subr.mxu0 0.0
    %1040 = vmatpush1.msra.mxu0 %v522
    %1041 = vmatprep.subr.mxu0 0.0
    %1042 = vmatpush1.msra.mxu0 %v523
    %1043 = vmatprep.subr.mxu0 0.0
    %1044 = vmatpush1.msra.mxu0 %v524
    %1045 = vmatprep.subr.mxu0 0.0
    %1046 = vmatpush1.msra.mxu0 %v525
    %1047 = vmatprep.subr.mxu0 0.0
    %1048 = vmatpush1.msra.mxu0 %v526
    %1049 = vmatprep.subr.mxu0 0.0
    %1050 = vmatpush1.msra.mxu0 %v527
    %1051 = vmatprep.subr.mxu0 0.0
    %1052 = vmatpush1.msra.mxu0 %v528
    %1053 = vmatprep.subr.mxu0 0.0
    %1054 = vmatpush1.msra.mxu0 %v529
    %1055 = vmatprep.subr.mxu0 0.0
    %1056 = vmatpush1.msra.mxu0 %v530
    %1057 = vmatprep.subr.mxu0 0.0
    %1058 = vmatpush1.msra.mxu0 %v531
    %1059 = vmatprep.subr.mxu0 0.0
    %1060 = vmatpush1.msra.mxu0 %v532
    %1061 = vmatprep.subr.mxu0 0.0
    %1062 = vmatpush1.msra.mxu0 %v533
    %1063 = vmatprep.subr.mxu0 0.0
    %1064 = vmatpush1.msra.mxu0 %v534
    %1065 = vmatprep.subr.mxu0 0.0
    %1066 = vmatpush1.msra.mxu0 %v535
    %1067 = vmatprep.subr.mxu0 0.0
    %1068 = vmatpush1.msra.mxu0 %v536
    %1069 = vmatprep.subr.mxu0 0.0
    %1070 = vmatpush1.msra.mxu0 %v537
    %1071 = vmatprep.subr.mxu0 0.0
    %1072 = vmatpush1.msra.mxu0 %v538
    %1073 = vmatprep.subr.mxu0 0.0
    %1074 = vmatpush1.msra.mxu0 %v539
    %1075 = vmatprep.subr.mxu0 0.0
    %1076 = vmatpush1.msra.mxu0 %v540
    %1077 = vmatprep.mubr.f32.mxu0 %v986
    %1078 = vmatmul.mubr.f32.gmra.mrb[0].mxu0 %v978
    %v1079 = vpop.f32.mrb[0].mxu0
    %v1080 = vadd.f32 0.0, %v1079
    %v1081 = vpop.f32.mrb[0].mxu0
    %1082 = vdwg.mxu0
    %1083 = vmatprep.subr.mxu0 0.0
    %1084 = vmatpush1.msra.mxu0 %v541
    %1085 = vmatprep.subr.mxu0 0.0
    %1086 = vmatpush1.msra.mxu0 %v542
    %1087 = vmatprep.subr.mxu0 0.0
    %1088 = vmatpush1.msra.mxu0 %v543
    %1089 = vmatprep.subr.mxu0 0.0
    %1090 = vmatpush1.msra.mxu0 %v544
    %1091 = vmatprep.subr.mxu0 0.0
    %1092 = vmatpush1.msra.mxu0 %v545
    %1093 = vmatprep.subr.mxu0 0.0
    %1094 = vmatpush1.msra.mxu0 %v546
    %1095 = vmatprep.subr.mxu0 0.0
    %1096 = vmatpush1.msra.mxu0 %v547
    %1097 = vmatprep.subr.mxu0 0.0
    %1098 = vmatpush1.msra.mxu0 %v548
    %1099 = vmatprep.subr.mxu0 0.0
    %1100 = vmatpush1.msra.mxu0 %v549
    %1101 = vmatprep.subr.mxu0 0.0
    %1102 = vmatpush1.msra.mxu0 %v550
    %1103 = vmatprep.subr.mxu0 0.0
    %1104 = vmatpush1.msra.mxu0 %v551
    %1105 = vmatprep.subr.mxu0 0.0
    %1106 = vmatpush1.msra.mxu0 %v552
    %1107 = vmatprep.subr.mxu0 0.0
    %1108 = vmatpush1.msra.mxu0 %v553
    %1109 = vmatprep.subr.mxu0 0.0
    %1110 = vmatpush1.msra.mxu0 %v554
    %1111 = vmatprep.subr.mxu0 0.0
    %1112 = vmatpush1.msra.mxu0 %v555
    %1113 = vmatprep.subr.mxu0 0.0
    %1114 = vmatpush1.msra.mxu0 %v556
    %1115 = vmatprep.subr.mxu0 0.0
    %1116 = vmatpush1.msra.mxu0 %v557
    %1117 = vmatprep.subr.mxu0 0.0
    %1118 = vmatpush1.msra.mxu0 %v558
    %1119 = vmatprep.subr.mxu0 0.0
    %1120 = vmatpush1.msra.mxu0 %v559
    %1121 = vmatprep.subr.mxu0 0.0
    %1122 = vmatpush1.msra.mxu0 %v560
    %1123 = vmatprep.subr.mxu0 0.0
    %1124 = vmatpush1.msra.mxu0 %v561
    %1125 = vmatprep.subr.mxu0 0.0
    %1126 = vmatpush1.msra.mxu0 %v562
    %1127 = vmatprep.subr.mxu0 0.0
    %1128 = vmatpush1.msra.mxu0 %v563
    %1129 = vmatprep.subr.mxu0 0.0
    %1130 = vmatpush1.msra.mxu0 %v564
    %1131 = vmatprep.subr.mxu0 0.0
    %1132 = vmatpush1.msra.mxu0 %v565
    %1133 = vmatprep.subr.mxu0 0.0
    %1134 = vmatpush1.msra.mxu0 %v566
    %1135 = vmatprep.subr.mxu0 0.0
    %1136 = vmatpush1.msra.mxu0 %v567
    %1137 = vmatprep.subr.mxu0 0.0
    %1138 = vmatpush1.msra.mxu0 %v568
    %1139 = vmatprep.subr.mxu0 0.0
    %1140 = vmatpush1.msra.mxu0 %v569
    %1141 = vmatprep.subr.mxu0 0.0
    %1142 = vmatpush1.msra.mxu0 %v570
    %1143 = vmatprep.subr.mxu0 0.0
    %1144 = vmatpush1.msra.mxu0 %v571
    %1145 = vmatprep.subr.mxu0 0.0
    %1146 = vmatpush1.msra.mxu0 %v572
    %1147 = vmatprep.mubr.f32.mxu0 %v987
    %1148 = vmatmul.mubr.f32.gmra.mrb[0].mxu0 %v985
    %v1149 = vpop.f32.mrb[0].mxu0
    %v1150 = vadd.f32 %v1080, %v1149
    %v1151 = vpop.f32.mrb[0].mxu0
    %1152 = vdwg.mxu0
    %1153 = vmatprep.subr.mxu0 0.0
    %1154 = vmatpush1.msra.mxu0 %v573
    %1155 = vmatprep.subr.mxu0 0.0
    %1156 = vmatpush1.msra.mxu0 %v574
    %1157 = vmatprep.subr.mxu0 0.0
    %1158 = vmatpush1.msra.mxu0 %v575
    %1159 = vmatprep.subr.mxu0 0.0
    %1160 = vmatpush1.msra.mxu0 %v576
    %1161 = vmatprep.subr.mxu0 0.0
    %1162 = vmatpush1.msra.mxu0 %v577
    %1163 = vmatprep.subr.mxu0 0.0
    %1164 = vmatpush1.msra.mxu0 %v578
    %1165 = vmatprep.subr.mxu0 0.0
    %1166 = vmatpush1.msra.mxu0 %v579
    %1167 = vmatprep.subr.mxu0 0.0
    %1168 = vmatpush1.msra.mxu0 %v580
    %1169 = vmatprep.subr.mxu0 0.0
    %1170 = vmatpush1.msra.mxu0 %v581
    %1171 = vmatprep.subr.mxu0 0.0
    %1172 = vmatpush1.msra.mxu0 %v582
    %1173 = vmatprep.subr.mxu0 0.0
    %1174 = vmatpush1.msra.mxu0 %v583
    %1175 = vmatprep.subr.mxu0 0.0
    %1176 = vmatpush1.msra.mxu0 %v584
    %1177 = vmatprep.subr.mxu0 0.0
    %1178 = vmatpush1.msra.mxu0 %v585
    %1179 = vmatprep.subr.mxu0 0.0
    %1180 = vmatpush1.msra.mxu0 %v586
    %1181 = vmatprep.subr.mxu0 0.0
    %1182 = vmatpush1.msra.mxu0 %v587
    %1183 = vmatprep.subr.mxu0 0.0
    %1184 = vmatpush1.msra.mxu0 %v588
    %1185 = vmatprep.subr.mxu0 0.0
    %1186 = vmatpush1.msra.mxu0 %v589
    %1187 = vmatprep.subr.mxu0 0.0
    %1188 = vmatpush1.msra.mxu0 %v590
    %1189 = vmatprep.subr.mxu0 0.0
    %1190 = vmatpush1.msra.mxu0 %v591
    %1191 = vmatprep.subr.mxu0 0.0
    %1192 = vmatpush1.msra.mxu0 %v592
    %1193 = vmatprep.subr.mxu0 0.0
    %1194 = vmatpush1.msra.mxu0 %v593
    %1195 = vmatprep.subr.mxu0 0.0
    %1196 = vmatpush1.msra.mxu0 %v594
    %1197 = vmatprep.subr.mxu0 0.0
    %1198 = vmatpush1.msra.mxu0 %v595
    %1199 = vmatprep.subr.mxu0 0.0
    %1200 = vmatpush1.msra.mxu0 %v596
    %1201 = vmatprep.subr.mxu0 0.0
    %1202 = vmatpush1.msra.mxu0 %v597
    %1203 = vmatprep.subr.mxu0 0.0
    %1204 = vmatpush1.msra.mxu0 %v598
    %1205 = vmatprep.subr.mxu0 0.0
    %1206 = vmatpush1.msra.mxu0 %v599
    %1207 = vmatprep.subr.mxu0 0.0
    %1208 = vmatpush1.msra.mxu0 %v600
    %1209 = vmatprep.subr.mxu0 0.0
    %1210 = vmatpush1.msra.mxu0 %v601
    %1211 = vmatprep.subr.mxu0 0.0
    %1212 = vmatpush1.msra.mxu0 %v602
    %1213 = vmatprep.subr.mxu0 0.0
    %1214 = vmatpush1.msra.mxu0 %v603
    %1215 = vmatprep.subr.mxu0 0.0
    %1216 = vmatpush1.msra.mxu0 %v604
    %1217 = vmatprep.mubr.f32.mxu0 %v1003
    %1218 = vmatmul.mubr.f32.gmra.mrb[0].mxu0 %v995
    %v1219 = vpop.f32.mrb[0].mxu0
    %v1220 = vadd.f32 %v1150, %v1219
    %v1221 = vpop.f32.mrb[0].mxu0
    %1222 = vdwg.mxu0
    %1223 = vmatprep.subr.mxu0 0.0
    %1224 = vmatpush1.msra.mxu0 %v605
    %1225 = vmatprep.subr.mxu0 0.0
    %1226 = vmatpush1.msra.mxu0 %v606
    %1227 = vmatprep.subr.mxu0 0.0
    %1228 = vmatpush1.msra.mxu0 %v607
    %1229 = vmatprep.subr.mxu0 0.0
    %1230 = vmatpush1.msra.mxu0 %v608
    %1231 = vmatprep.subr.mxu0 0.0
    %1232 = vmatpush1.msra.mxu0 %v609
    %1233 = vmatprep.subr.mxu0 0.0
    %1234 = vmatpush1.msra.mxu0 %v610
    %1235 = vmatprep.subr.mxu0 0.0
    %1236 = vmatpush1.msra.mxu0 %v611
    %1237 = vmatprep.subr.mxu0 0.0
    %1238 = vmatpush1.msra.mxu0 %v612
    %1239 = vmatprep.subr.mxu0 0.0
    %1240 = vmatpush1.msra.mxu0 %v613
    %1241 = vmatprep.subr.mxu0 0.0
    %1242 = vmatpush1.msra.mxu0 %v614
    %1243 = vmatprep.subr.mxu0 0.0
    %1244 = vmatpush1.msra.mxu0 %v615
    %1245 = vmatprep.subr.mxu0 0.0
    %1246 = vmatpush1.msra.mxu0 %v616
    %1247 = vmatprep.subr.mxu0 0.0
    %1248 = vmatpush1.msra.mxu0 %v617
    %1249 = vmatprep.subr.mxu0 0.0
    %1250 = vmatpush1.msra.mxu0 %v618
    %1251 = vmatprep.subr.mxu0 0.0
    %1252 = vmatpush1.msra.mxu0 %v619
    %1253 = vmatprep.subr.mxu0 0.0
    %1254 = vmatpush1.msra.mxu0 %v620
    %1255 = vmatprep.subr.mxu0 0.0
    %1256 = vmatpush1.msra.mxu0 %v621
    %1257 = vmatprep.subr.mxu0 0.0
    %1258 = vmatpush1.msra.mxu0 %v622
    %1259 = vmatprep.subr.mxu0 0.0
    %1260 = vmatpush1.msra.mxu0 %v623
    %1261 = vmatprep.subr.mxu0 0.0
    %1262 = vmatpush1.msra.mxu0 %v624
    %1263 = vmatprep.subr.mxu0 0.0
    %1264 = vmatpush1.msra.mxu0 %v625
    %1265 = vmatprep.subr.mxu0 0.0
    %1266 = vmatpush1.msra.mxu0 %v626
    %1267 = vmatprep.subr.mxu0 0.0
    %1268 = vmatpush1.msra.mxu0 %v627
    %1269 = vmatprep.subr.mxu0 0.0
    %1270 = vmatpush1.msra.mxu0 %v628
    %1271 = vmatprep.subr.mxu0 0.0
    %1272 = vmatpush1.msra.mxu0 %v629
    %1273 = vmatprep.subr.mxu0 0.0
    %1274 = vmatpush1.msra.mxu0 %v630
    %1275 = vmatprep.subr.mxu0 0.0
    %1276 = vmatpush1.msra.mxu0 %v631
    %1277 = vmatprep.subr.mxu0 0.0
    %1278 = vmatpush1.msra.mxu0 %v632
    %1279 = vmatprep.subr.mxu0 0.0
    %1280 = vmatpush1.msra.mxu0 %v633
    %1281 = vmatprep.subr.mxu0 0.0
    %1282 = vmatpush1.msra.mxu0 %v634
    %1283 = vmatprep.subr.mxu0 0.0
    %1284 = vmatpush1.msra.mxu0 %v635
    %1285 = vmatprep.subr.mxu0 0.0
    %1286 = vmatpush1.msra.mxu0 %v636
    %1287 = vmatprep.mubr.f32.mxu0 %v1004
    %1288 = vmatmul.mubr.f32.gmra.mrb[0].mxu0 %v1002
    %v1289 = vpop.f32.mrb[0].mxu0
    %v1290 = vadd.f32 %v1220, %v1289
    %v1291 = vpop.f32.mrb[0].mxu0
    %1292 = vdwg.mxu0
    %v1293 = vadd.f32 %v968, %v1290
    %1294 = vst [vmem:[#allocation2 + $0x2] sm:$0x3] %v1293
    %v1295 = vld [vmem:[#allocation8] sm:$0xff]
    %v1296 = vld [vmem:[#allocation8 + $0x8] sm:$0xff]
    %v1297 = vld [vmem:[#allocation2 + $0x4] sm:$0x3]
    %v1300 = vcombine.high %v1295, %v1295
    %v1302 = vunpack.c.l.s4 1983009808
    %v1303 = vunpack.c.0.s8 %v1302
    %v1304 = vlaneseq
    %v1305 = vshrl.u32 %v1304, 7
    %v1306 = vsub.s32 %v1303, %v1305
    %v1307 = vrot.slane %v1295, %v1306
    %v1309 = vunpack.c.l.s4 1983009808
    %v1310 = vunpack.c.0.s8 %v1309
    %v1311 = vlaneseq
    %v1312 = vshrl.u32 %v1311, 7
    %v1313 = vsub.s32 %v1310, %v1312
    %v1314 = vrot.slane %v1300, %v1313
    %v1315 = vcombine.high %v1307, %v1307
    %v1316 = vcombine.high %v1314, %v1314
    %v1317 = vcombine.high %v1296, %v1296
    %v1319 = vunpack.c.l.s4 1983009808
    %v1320 = vunpack.c.0.s8 %v1319
    %v1321 = vlaneseq
    %v1322 = vshrl.u32 %v1321, 7
    %v1323 = vsub.s32 %v1320, %v1322
    %v1324 = vrot.slane %v1296, %v1323
    %v1326 = vunpack.c.l.s4 1983009808
    %v1327 = vunpack.c.0.s8 %v1326
    %v1328 = vlaneseq
    %v1329 = vshrl.u32 %v1328, 7
    %v1330 = vsub.s32 %v1327, %v1329
    %v1331 = vrot.slane %v1317, %v1330
    %v1332 = vcombine.high %v1324, %v1324
    %v1333 = vcombine.high %v1331, %v1331
    %1342 = vmatprep.subr.mxu0 0.0
    %1343 = vmatpush1.msra.mxu0 %v253
    %1344 = vmatprep.subr.mxu0 0.0
    %1345 = vmatpush1.msra.mxu0 %v254
    %1346 = vmatprep.subr.mxu0 0.0
    %1347 = vmatpush1.msra.mxu0 %v255
    %1348 = vmatprep.subr.mxu0 0.0
    %1349 = vmatpush1.msra.mxu0 %v256
    %1350 = vmatprep.subr.mxu0 0.0
    %1351 = vmatpush1.msra.mxu0 %v257
    %1352 = vmatprep.subr.mxu0 0.0
    %1353 = vmatpush1.msra.mxu0 %v258
    %1354 = vmatprep.subr.mxu0 0.0
    %1355 = vmatpush1.msra.mxu0 %v259
    %1356 = vmatprep.subr.mxu0 0.0
    %1357 = vmatpush1.msra.mxu0 %v260
    %1358 = vmatprep.subr.mxu0 0.0
    %1359 = vmatpush1.msra.mxu0 %v261
    %1360 = vmatprep.subr.mxu0 0.0
    %1361 = vmatpush1.msra.mxu0 %v262
    %1362 = vmatprep.subr.mxu0 0.0
    %1363 = vmatpush1.msra.mxu0 %v263
    %1364 = vmatprep.subr.mxu0 0.0
    %1365 = vmatpush1.msra.mxu0 %v264
    %1366 = vmatprep.subr.mxu0 0.0
    %1367 = vmatpush1.msra.mxu0 %v265
    %1368 = vmatprep.subr.mxu0 0.0
    %1369 = vmatpush1.msra.mxu0 %v266
    %1370 = vmatprep.subr.mxu0 0.0
    %1371 = vmatpush1.msra.mxu0 %v267
    %1372 = vmatprep.subr.mxu0 0.0
    %1373 = vmatpush1.msra.mxu0 %v268
    %1374 = vmatprep.subr.mxu0 0.0
    %1375 = vmatpush1.msra.mxu0 %v269
    %1376 = vmatprep.subr.mxu0 0.0
    %1377 = vmatpush1.msra.mxu0 %v270
    %1378 = vmatprep.subr.mxu0 0.0
    %1379 = vmatpush1.msra.mxu0 %v271
    %1380 = vmatprep.subr.mxu0 0.0
    %1381 = vmatpush1.msra.mxu0 %v272
    %1382 = vmatprep.subr.mxu0 0.0
    %1383 = vmatpush1.msra.mxu0 %v273
    %1384 = vmatprep.subr.mxu0 0.0
    %1385 = vmatpush1.msra.mxu0 %v274
    %1386 = vmatprep.subr.mxu0 0.0
    %1387 = vmatpush1.msra.mxu0 %v275
    %1388 = vmatprep.subr.mxu0 0.0
    %1389 = vmatpush1.msra.mxu0 %v276
    %1390 = vmatprep.subr.mxu0 0.0
    %1391 = vmatpush1.msra.mxu0 %v277
    %1392 = vmatprep.subr.mxu0 0.0
    %1393 = vmatpush1.msra.mxu0 %v278
    %1394 = vmatprep.subr.mxu0 0.0
    %1395 = vmatpush1.msra.mxu0 %v279
    %1396 = vmatprep.subr.mxu0 0.0
    %1397 = vmatpush1.msra.mxu0 %v280
    %1398 = vmatprep.subr.mxu0 0.0
    %1399 = vmatpush1.msra.mxu0 %v281
    %1400 = vmatprep.subr.mxu0 0.0
    %1401 = vmatpush1.msra.mxu0 %v282
    %1402 = vmatprep.subr.mxu0 0.0
    %1403 = vmatpush1.msra.mxu0 %v283
    %1404 = vmatprep.subr.mxu0 0.0
    %1405 = vmatpush1.msra.mxu0 %v284
    %1406 = vmatprep.mubr.f32.mxu0 %v1315
    %1407 = vmatmul.mubr.f32.gmra.mrb[0].mxu0 %v1307
    %v1408 = vpop.f32.mrb[0].mxu0
    %v1409 = vadd.f32 0.0, %v1408
    %v1410 = vpop.f32.mrb[0].mxu0
    %1411 = vdwg.mxu0
    %1412 = vmatprep.subr.mxu0 0.0
    %1413 = vmatpush1.msra.mxu0 %v285
    %1414 = vmatprep.subr.mxu0 0.0
    %1415 = vmatpush1.msra.mxu0 %v286
    %1416 = vmatprep.subr.mxu0 0.0
    %1417 = vmatpush1.msra.mxu0 %v287
    %1418 = vmatprep.subr.mxu0 0.0
    %1419 = vmatpush1.msra.mxu0 %v288
    %1420 = vmatprep.subr.mxu0 0.0
    %1421 = vmatpush1.msra.mxu0 %v289
    %1422 = vmatprep.subr.mxu0 0.0
    %1423 = vmatpush1.msra.mxu0 %v290
    %1424 = vmatprep.subr.mxu0 0.0
    %1425 = vmatpush1.msra.mxu0 %v291
    %1426 = vmatprep.subr.mxu0 0.0
    %1427 = vmatpush1.msra.mxu0 %v292
    %1428 = vmatprep.subr.mxu0 0.0
    %1429 = vmatpush1.msra.mxu0 %v293
    %1430 = vmatprep.subr.mxu0 0.0
    %1431 = vmatpush1.msra.mxu0 %v294
    %1432 = vmatprep.subr.mxu0 0.0
    %1433 = vmatpush1.msra.mxu0 %v295
    %1434 = vmatprep.subr.mxu0 0.0
    %1435 = vmatpush1.msra.mxu0 %v296
    %1436 = vmatprep.subr.mxu0 0.0
    %1437 = vmatpush1.msra.mxu0 %v297
    %1438 = vmatprep.subr.mxu0 0.0
    %1439 = vmatpush1.msra.mxu0 %v298
    %1440 = vmatprep.subr.mxu0 0.0
    %1441 = vmatpush1.msra.mxu0 %v299
    %1442 = vmatprep.subr.mxu0 0.0
    %1443 = vmatpush1.msra.mxu0 %v300
    %1444 = vmatprep.subr.mxu0 0.0
    %1445 = vmatpush1.msra.mxu0 %v301
    %1446 = vmatprep.subr.mxu0 0.0
    %1447 = vmatpush1.msra.mxu0 %v302
    %1448 = vmatprep.subr.mxu0 0.0
    %1449 = vmatpush1.msra.mxu0 %v303
    %1450 = vmatprep.subr.mxu0 0.0
    %1451 = vmatpush1.msra.mxu0 %v304
    %1452 = vmatprep.subr.mxu0 0.0
    %1453 = vmatpush1.msra.mxu0 %v305
    %1454 = vmatprep.subr.mxu0 0.0
    %1455 = vmatpush1.msra.mxu0 %v306
    %1456 = vmatprep.subr.mxu0 0.0
    %1457 = vmatpush1.msra.mxu0 %v307
    %1458 = vmatprep.subr.mxu0 0.0
    %1459 = vmatpush1.msra.mxu0 %v308
    %1460 = vmatprep.subr.mxu0 0.0
    %1461 = vmatpush1.msra.mxu0 %v309
    %1462 = vmatprep.subr.mxu0 0.0
    %1463 = vmatpush1.msra.mxu0 %v310
    %1464 = vmatprep.subr.mxu0 0.0
    %1465 = vmatpush1.msra.mxu0 %v311
    %1466 = vmatprep.subr.mxu0 0.0
    %1467 = vmatpush1.msra.mxu0 %v312
    %1468 = vmatprep.subr.mxu0 0.0
    %1469 = vmatpush1.msra.mxu0 %v313
    %1470 = vmatprep.subr.mxu0 0.0
    %1471 = vmatpush1.msra.mxu0 %v314
    %1472 = vmatprep.subr.mxu0 0.0
    %1473 = vmatpush1.msra.mxu0 %v315
    %1474 = vmatprep.subr.mxu0 0.0
    %1475 = vmatpush1.msra.mxu0 %v316
    %1476 = vmatprep.mubr.f32.mxu0 %v1316
    %1477 = vmatmul.mubr.f32.gmra.mrb[0].mxu0 %v1314
    %v1478 = vpop.f32.mrb[0].mxu0
    %v1479 = vadd.f32 %v1409, %v1478
    %v1480 = vpop.f32.mrb[0].mxu0
    %1481 = vdwg.mxu0
    %1482 = vmatprep.subr.mxu0 0.0
    %1483 = vmatpush1.msra.mxu0 %v317
    %1484 = vmatprep.subr.mxu0 0.0
    %1485 = vmatpush1.msra.mxu0 %v318
    %1486 = vmatprep.subr.mxu0 0.0
    %1487 = vmatpush1.msra.mxu0 %v319
    %1488 = vmatprep.subr.mxu0 0.0
    %1489 = vmatpush1.msra.mxu0 %v320
    %1490 = vmatprep.subr.mxu0 0.0
    %1491 = vmatpush1.msra.mxu0 %v321
    %1492 = vmatprep.subr.mxu0 0.0
    %1493 = vmatpush1.msra.mxu0 %v322
    %1494 = vmatprep.subr.mxu0 0.0
    %1495 = vmatpush1.msra.mxu0 %v323
    %1496 = vmatprep.subr.mxu0 0.0
    %1497 = vmatpush1.msra.mxu0 %v324
    %1498 = vmatprep.subr.mxu0 0.0
    %1499 = vmatpush1.msra.mxu0 %v325
    %1500 = vmatprep.subr.mxu0 0.0
    %1501 = vmatpush1.msra.mxu0 %v326
    %1502 = vmatprep.subr.mxu0 0.0
    %1503 = vmatpush1.msra.mxu0 %v327
    %1504 = vmatprep.subr.mxu0 0.0
    %1505 = vmatpush1.msra.mxu0 %v328
    %1506 = vmatprep.subr.mxu0 0.0
    %1507 = vmatpush1.msra.mxu0 %v329
    %1508 = vmatprep.subr.mxu0 0.0
    %1509 = vmatpush1.msra.mxu0 %v330
    %1510 = vmatprep.subr.mxu0 0.0
    %1511 = vmatpush1.msra.mxu0 %v331
    %1512 = vmatprep.subr.mxu0 0.0
    %1513 = vmatpush1.msra.mxu0 %v332
    %1514 = vmatprep.subr.mxu0 0.0
    %1515 = vmatpush1.msra.mxu0 %v333
    %1516 = vmatprep.subr.mxu0 0.0
    %1517 = vmatpush1.msra.mxu0 %v334
    %1518 = vmatprep.subr.mxu0 0.0
    %1519 = vmatpush1.msra.mxu0 %v335
    %1520 = vmatprep.subr.mxu0 0.0
    %1521 = vmatpush1.msra.mxu0 %v336
    %1522 = vmatprep.subr.mxu0 0.0
    %1523 = vmatpush1.msra.mxu0 %v337
    %1524 = vmatprep.subr.mxu0 0.0
    %1525 = vmatpush1.msra.mxu0 %v338
    %1526 = vmatprep.subr.mxu0 0.0
    %1527 = vmatpush1.msra.mxu0 %v339
    %1528 = vmatprep.subr.mxu0 0.0
    %1529 = vmatpush1.msra.mxu0 %v340
    %1530 = vmatprep.subr.mxu0 0.0
    %1531 = vmatpush1.msra.mxu0 %v341
    %1532 = vmatprep.subr.mxu0 0.0
    %1533 = vmatpush1.msra.mxu0 %v342
    %1534 = vmatprep.subr.mxu0 0.0
    %1535 = vmatpush1.msra.mxu0 %v343
    %1536 = vmatprep.subr.mxu0 0.0
    %1537 = vmatpush1.msra.mxu0 %v344
    %1538 = vmatprep.subr.mxu0 0.0
    %1539 = vmatpush1.msra.mxu0 %v345
    %1540 = vmatprep.subr.mxu0 0.0
    %1541 = vmatpush1.msra.mxu0 %v346
    %1542 = vmatprep.subr.mxu0 0.0
    %1543 = vmatpush1.msra.mxu0 %v347
    %1544 = vmatprep.subr.mxu0 0.0
    %1545 = vmatpush1.msra.mxu0 %v348
    %1546 = vmatprep.mubr.f32.mxu0 %v1332
    %1547 = vmatmul.mubr.f32.gmra.mrb[0].mxu0 %v1324
    %v1548 = vpop.f32.mrb[0].mxu0
    %v1549 = vadd.f32 %v1479, %v1548
    %v1550 = vpop.f32.mrb[0].mxu0
    %1551 = vdwg.mxu0
    %1552 = vmatprep.subr.mxu0 0.0
    %1553 = vmatpush1.msra.mxu0 %v349
    %1554 = vmatprep.subr.mxu0 0.0
    %1555 = vmatpush1.msra.mxu0 %v350
    %1556 = vmatprep.subr.mxu0 0.0
    %1557 = vmatpush1.msra.mxu0 %v351
    %1558 = vmatprep.subr.mxu0 0.0
    %1559 = vmatpush1.msra.mxu0 %v352
    %1560 = vmatprep.subr.mxu0 0.0
    %1561 = vmatpush1.msra.mxu0 %v353
    %1562 = vmatprep.subr.mxu0 0.0
    %1563 = vmatpush1.msra.mxu0 %v354
    %1564 = vmatprep.subr.mxu0 0.0
    %1565 = vmatpush1.msra.mxu0 %v355
    %1566 = vmatprep.subr.mxu0 0.0
    %1567 = vmatpush1.msra.mxu0 %v356
    %1568 = vmatprep.subr.mxu0 0.0
    %1569 = vmatpush1.msra.mxu0 %v357
    %1570 = vmatprep.subr.mxu0 0.0
    %1571 = vmatpush1.msra.mxu0 %v358
    %1572 = vmatprep.subr.mxu0 0.0
    %1573 = vmatpush1.msra.mxu0 %v359
    %1574 = vmatprep.subr.mxu0 0.0
    %1575 = vmatpush1.msra.mxu0 %v360
    %1576 = vmatprep.subr.mxu0 0.0
    %1577 = vmatpush1.msra.mxu0 %v361
    %1578 = vmatprep.subr.mxu0 0.0
    %1579 = vmatpush1.msra.mxu0 %v362
    %1580 = vmatprep.subr.mxu0 0.0
    %1581 = vmatpush1.msra.mxu0 %v363
    %1582 = vmatprep.subr.mxu0 0.0
    %1583 = vmatpush1.msra.mxu0 %v364
    %1584 = vmatprep.subr.mxu0 0.0
    %1585 = vmatpush1.msra.mxu0 %v365
    %1586 = vmatprep.subr.mxu0 0.0
    %1587 = vmatpush1.msra.mxu0 %v366
    %1588 = vmatprep.subr.mxu0 0.0
    %1589 = vmatpush1.msra.mxu0 %v367
    %1590 = vmatprep.subr.mxu0 0.0
    %1591 = vmatpush1.msra.mxu0 %v368
    %1592 = vmatprep.subr.mxu0 0.0
    %1593 = vmatpush1.msra.mxu0 %v369
    %1594 = vmatprep.subr.mxu0 0.0
    %1595 = vmatpush1.msra.mxu0 %v370
    %1596 = vmatprep.subr.mxu0 0.0
    %1597 = vmatpush1.msra.mxu0 %v371
    %1598 = vmatprep.subr.mxu0 0.0
    %1599 = vmatpush1.msra.mxu0 %v372
    %1600 = vmatprep.subr.mxu0 0.0
    %1601 = vmatpush1.msra.mxu0 %v373
    %1602 = vmatprep.subr.mxu0 0.0
    %1603 = vmatpush1.msra.mxu0 %v374
    %1604 = vmatprep.subr.mxu0 0.0
    %1605 = vmatpush1.msra.mxu0 %v375
    %1606 = vmatprep.subr.mxu0 0.0
    %1607 = vmatpush1.msra.mxu0 %v376
    %1608 = vmatprep.subr.mxu0 0.0
    %1609 = vmatpush1.msra.mxu0 %v377
    %1610 = vmatprep.subr.mxu0 0.0
    %1611 = vmatpush1.msra.mxu0 %v378
    %1612 = vmatprep.subr.mxu0 0.0
    %1613 = vmatpush1.msra.mxu0 %v379
    %1614 = vmatprep.subr.mxu0 0.0
    %1615 = vmatpush1.msra.mxu0 %v380
    %1616 = vmatprep.mubr.f32.mxu0 %v1333
    %1617 = vmatmul.mubr.f32.gmra.mrb[0].mxu0 %v1331
    %v1618 = vpop.f32.mrb[0].mxu0
    %v1619 = vadd.f32 %v1549, %v1618
    %v1620 = vpop.f32.mrb[0].mxu0
    %1621 = vdwg.mxu0
    %v1622 = vadd.f32 %v1297, %v1619
    %1623 = vst [vmem:[#allocation2 + $0x4] sm:$0x3] %v1622
    %v1624 = vld [vmem:[#allocation9] sm:$0xff]
    %v1625 = vld [vmem:[#allocation9 + $0x8] sm:$0xff]
    %v1626 = vld [vmem:[#allocation2 + $0x6] sm:$0x3]
    %v1629 = vcombine.high %v1624, %v1624
    %v1631 = vunpack.c.l.s4 1983009808
    %v1632 = vunpack.c.0.s8 %v1631
    %v1633 = vlaneseq
    %v1634 = vshrl.u32 %v1633, 7
    %v1635 = vsub.s32 %v1632, %v1634
    %v1636 = vrot.slane %v1624, %v1635
    %v1638 = vunpack.c.l.s4 1983009808
    %v1639 = vunpack.c.0.s8 %v1638
    %v1640 = vlaneseq
    %v1641 = vshrl.u32 %v1640, 7
    %v1642 = vsub.s32 %v1639, %v1641
    %v1643 = vrot.slane %v1629, %v1642
    %v1644 = vcombine.high %v1636, %v1636
    %v1645 = vcombine.high %v1643, %v1643
    %v1646 = vcombine.high %v1625, %v1625
    %v1648 = vunpack.c.l.s4 1983009808
    %v1649 = vunpack.c.0.s8 %v1648
    %v1650 = vlaneseq
    %v1651 = vshrl.u32 %v1650, 7
    %v1652 = vsub.s32 %v1649, %v1651
    %v1653 = vrot.slane %v1625, %v1652
    %v1655 = vunpack.c.l.s4 1983009808
    %v1656 = vunpack.c.0.s8 %v1655
    %v1657 = vlaneseq
    %v1658 = vshrl.u32 %v1657, 7
    %v1659 = vsub.s32 %v1656, %v1658
    %v1660 = vrot.slane %v1646, %v1659
    %v1661 = vcombine.high %v1653, %v1653
    %v1662 = vcombine.high %v1660, %v1660
    %1671 = vmatprep.subr.mxu0 0.0
    %1672 = vmatpush1.msra.mxu0 %v509
    %1673 = vmatprep.subr.mxu0 0.0
    %1674 = vmatpush1.msra.mxu0 %v510
    %1675 = vmatprep.subr.mxu0 0.0
    %1676 = vmatpush1.msra.mxu0 %v511
    %1677 = vmatprep.subr.mxu0 0.0
    %1678 = vmatpush1.msra.mxu0 %v512
    %1679 = vmatprep.subr.mxu0 0.0
    %1680 = vmatpush1.msra.mxu0 %v513
    %1681 = vmatprep.subr.mxu0 0.0
    %1682 = vmatpush1.msra.mxu0 %v514
    %1683 = vmatprep.subr.mxu0 0.0
    %1684 = vmatpush1.msra.mxu0 %v515
    %1685 = vmatprep.subr.mxu0 0.0
    %1686 = vmatpush1.msra.mxu0 %v516
    %1687 = vmatprep.subr.mxu0 0.0
    %1688 = vmatpush1.msra.mxu0 %v517
    %1689 = vmatprep.subr.mxu0 0.0
    %1690 = vmatpush1.msra.mxu0 %v518
    %1691 = vmatprep.subr.mxu0 0.0
    %1692 = vmatpush1.msra.mxu0 %v519
    %1693 = vmatprep.subr.mxu0 0.0
    %1694 = vmatpush1.msra.mxu0 %v520
    %1695 = vmatprep.subr.mxu0 0.0
    %1696 = vmatpush1.msra.mxu0 %v521
    %1697 = vmatprep.subr.mxu0 0.0
    %1698 = vmatpush1.msra.mxu0 %v522
    %1699 = vmatprep.subr.mxu0 0.0
    %1700 = vmatpush1.msra.mxu0 %v523
    %1701 = vmatprep.subr.mxu0 0.0
    %1702 = vmatpush1.msra.mxu0 %v524
    %1703 = vmatprep.subr.mxu0 0.0
    %1704 = vmatpush1.msra.mxu0 %v525
    %1705 = vmatprep.subr.mxu0 0.0
    %1706 = vmatpush1.msra.mxu0 %v526
    %1707 = vmatprep.subr.mxu0 0.0
    %1708 = vmatpush1.msra.mxu0 %v527
    %1709 = vmatprep.subr.mxu0 0.0
    %1710 = vmatpush1.msra.mxu0 %v528
    %1711 = vmatprep.subr.mxu0 0.0
    %1712 = vmatpush1.msra.mxu0 %v529
    %1713 = vmatprep.subr.mxu0 0.0
    %1714 = vmatpush1.msra.mxu0 %v530
    %1715 = vmatprep.subr.mxu0 0.0
    %1716 = vmatpush1.msra.mxu0 %v531
    %1717 = vmatprep.subr.mxu0 0.0
    %1718 = vmatpush1.msra.mxu0 %v532
    %1719 = vmatprep.subr.mxu0 0.0
    %1720 = vmatpush1.msra.mxu0 %v533
    %1721 = vmatprep.subr.mxu0 0.0
    %1722 = vmatpush1.msra.mxu0 %v534
    %1723 = vmatprep.subr.mxu0 0.0
    %1724 = vmatpush1.msra.mxu0 %v535
    %1725 = vmatprep.subr.mxu0 0.0
    %1726 = vmatpush1.msra.mxu0 %v536
    %1727 = vmatprep.subr.mxu0 0.0
    %1728 = vmatpush1.msra.mxu0 %v537
    %1729 = vmatprep.subr.mxu0 0.0
    %1730 = vmatpush1.msra.mxu0 %v538
    %1731 = vmatprep.subr.mxu0 0.0
    %1732 = vmatpush1.msra.mxu0 %v539
    %1733 = vmatprep.subr.mxu0 0.0
    %1734 = vmatpush1.msra.mxu0 %v540
    %1735 = vmatprep.mubr.f32.mxu0 %v1644
    %1736 = vmatmul.mubr.f32.gmra.mrb[0].mxu0 %v1636
    %v1737 = vpop.f32.mrb[0].mxu0
    %v1738 = vadd.f32 0.0, %v1737
    %v1739 = vpop.f32.mrb[0].mxu0
    %1740 = vdwg.mxu0
    %1741 = vmatprep.subr.mxu0 0.0
    %1742 = vmatpush1.msra.mxu0 %v541
    %1743 = vmatprep.subr.mxu0 0.0
    %1744 = vmatpush1.msra.mxu0 %v542
    %1745 = vmatprep.subr.mxu0 0.0
    %1746 = vmatpush1.msra.mxu0 %v543
    %1747 = vmatprep.subr.mxu0 0.0
    %1748 = vmatpush1.msra.mxu0 %v544
    %1749 = vmatprep.subr.mxu0 0.0
    %1750 = vmatpush1.msra.mxu0 %v545
    %1751 = vmatprep.subr.mxu0 0.0
    %1752 = vmatpush1.msra.mxu0 %v546
    %1753 = vmatprep.subr.mxu0 0.0
    %1754 = vmatpush1.msra.mxu0 %v547
    %1755 = vmatprep.subr.mxu0 0.0
    %1756 = vmatpush1.msra.mxu0 %v548
    %1757 = vmatprep.subr.mxu0 0.0
    %1758 = vmatpush1.msra.mxu0 %v549
    %1759 = vmatprep.subr.mxu0 0.0
    %1760 = vmatpush1.msra.mxu0 %v550
    %1761 = vmatprep.subr.mxu0 0.0
    %1762 = vmatpush1.msra.mxu0 %v551
    %1763 = vmatprep.subr.mxu0 0.0
    %1764 = vmatpush1.msra.mxu0 %v552
    %1765 = vmatprep.subr.mxu0 0.0
    %1766 = vmatpush1.msra.mxu0 %v553
    %1767 = vmatprep.subr.mxu0 0.0
    %1768 = vmatpush1.msra.mxu0 %v554
    %1769 = vmatprep.subr.mxu0 0.0
    %1770 = vmatpush1.msra.mxu0 %v555
    %1771 = vmatprep.subr.mxu0 0.0
    %1772 = vmatpush1.msra.mxu0 %v556
    %1773 = vmatprep.subr.mxu0 0.0
    %1774 = vmatpush1.msra.mxu0 %v557
    %1775 = vmatprep.subr.mxu0 0.0
    %1776 = vmatpush1.msra.mxu0 %v558
    %1777 = vmatprep.subr.mxu0 0.0
    %1778 = vmatpush1.msra.mxu0 %v559
    %1779 = vmatprep.subr.mxu0 0.0
    %1780 = vmatpush1.msra.mxu0 %v560
    %1781 = vmatprep.subr.mxu0 0.0
    %1782 = vmatpush1.msra.mxu0 %v561
    %1783 = vmatprep.subr.mxu0 0.0
    %1784 = vmatpush1.msra.mxu0 %v562
    %1785 = vmatprep.subr.mxu0 0.0
    %1786 = vmatpush1.msra.mxu0 %v563
    %1787 = vmatprep.subr.mxu0 0.0
    %1788 = vmatpush1.msra.mxu0 %v564
    %1789 = vmatprep.subr.mxu0 0.0
    %1790 = vmatpush1.msra.mxu0 %v565
    %1791 = vmatprep.subr.mxu0 0.0
    %1792 = vmatpush1.msra.mxu0 %v566
    %1793 = vmatprep.subr.mxu0 0.0
    %1794 = vmatpush1.msra.mxu0 %v567
    %1795 = vmatprep.subr.mxu0 0.0
    %1796 = vmatpush1.msra.mxu0 %v568
    %1797 = vmatprep.subr.mxu0 0.0
    %1798 = vmatpush1.msra.mxu0 %v569
    %1799 = vmatprep.subr.mxu0 0.0
    %1800 = vmatpush1.msra.mxu0 %v570
    %1801 = vmatprep.subr.mxu0 0.0
    %1802 = vmatpush1.msra.mxu0 %v571
    %1803 = vmatprep.subr.mxu0 0.0
    %1804 = vmatpush1.msra.mxu0 %v572
    %1805 = vmatprep.mubr.f32.mxu0 %v1645
    %1806 = vmatmul.mubr.f32.gmra.mrb[0].mxu0 %v1643
    %v1807 = vpop.f32.mrb[0].mxu0
    %v1808 = vadd.f32 %v1738, %v1807
    %v1809 = vpop.f32.mrb[0].mxu0
    %1810 = vdwg.mxu0
    %1811 = vmatprep.subr.mxu0 0.0
    %1812 = vmatpush1.msra.mxu0 %v573
    %1813 = vmatprep.subr.mxu0 0.0
    %1814 = vmatpush1.msra.mxu0 %v574
    %1815 = vmatprep.subr.mxu0 0.0
    %1816 = vmatpush1.msra.mxu0 %v575
    %1817 = vmatprep.subr.mxu0 0.0
    %1818 = vmatpush1.msra.mxu0 %v576
    %1819 = vmatprep.subr.mxu0 0.0
    %1820 = vmatpush1.msra.mxu0 %v577
    %1821 = vmatprep.subr.mxu0 0.0
    %1822 = vmatpush1.msra.mxu0 %v578
    %1823 = vmatprep.subr.mxu0 0.0
    %1824 = vmatpush1.msra.mxu0 %v579
    %1825 = vmatprep.subr.mxu0 0.0
    %1826 = vmatpush1.msra.mxu0 %v580
    %1827 = vmatprep.subr.mxu0 0.0
    %1828 = vmatpush1.msra.mxu0 %v581
    %1829 = vmatprep.subr.mxu0 0.0
    %1830 = vmatpush1.msra.mxu0 %v582
    %1831 = vmatprep.subr.mxu0 0.0
    %1832 = vmatpush1.msra.mxu0 %v583
    %1833 = vmatprep.subr.mxu0 0.0
    %1834 = vmatpush1.msra.mxu0 %v584
    %1835 = vmatprep.subr.mxu0 0.0
    %1836 = vmatpush1.msra.mxu0 %v585
    %1837 = vmatprep.subr.mxu0 0.0
    %1838 = vmatpush1.msra.mxu0 %v586
    %1839 = vmatprep.subr.mxu0 0.0
    %1840 = vmatpush1.msra.mxu0 %v587
    %1841 = vmatprep.subr.mxu0 0.0
    %1842 = vmatpush1.msra.mxu0 %v588
    %1843 = vmatprep.subr.mxu0 0.0
    %1844 = vmatpush1.msra.mxu0 %v589
    %1845 = vmatprep.subr.mxu0 0.0
    %1846 = vmatpush1.msra.mxu0 %v590
    %1847 = vmatprep.subr.mxu0 0.0
    %1848 = vmatpush1.msra.mxu0 %v591
    %1849 = vmatprep.subr.mxu0 0.0
    %1850 = vmatpush1.msra.mxu0 %v592
    %1851 = vmatprep.subr.mxu0 0.0
    %1852 = vmatpush1.msra.mxu0 %v593
    %1853 = vmatprep.subr.mxu0 0.0
    %1854 = vmatpush1.msra.mxu0 %v594
    %1855 = vmatprep.subr.mxu0 0.0
    %1856 = vmatpush1.msra.mxu0 %v595
    %1857 = vmatprep.subr.mxu0 0.0
    %1858 = vmatpush1.msra.mxu0 %v596
    %1859 = vmatprep.subr.mxu0 0.0
    %1860 = vmatpush1.msra.mxu0 %v597
    %1861 = vmatprep.subr.mxu0 0.0
    %1862 = vmatpush1.msra.mxu0 %v598
    %1863 = vmatprep.subr.mxu0 0.0
    %1864 = vmatpush1.msra.mxu0 %v599
    %1865 = vmatprep.subr.mxu0 0.0
    %1866 = vmatpush1.msra.mxu0 %v600
    %1867 = vmatprep.subr.mxu0 0.0
    %1868 = vmatpush1.msra.mxu0 %v601
    %1869 = vmatprep.subr.mxu0 0.0
    %1870 = vmatpush1.msra.mxu0 %v602
    %1871 = vmatprep.subr.mxu0 0.0
    %1872 = vmatpush1.msra.mxu0 %v603
    %1873 = vmatprep.subr.mxu0 0.0
    %1874 = vmatpush1.msra.mxu0 %v604
    %1875 = vmatprep.mubr.f32.mxu0 %v1661
    %1876 = vmatmul.mubr.f32.gmra.mrb[0].mxu0 %v1653
    %v1877 = vpop.f32.mrb[0].mxu0
    %v1878 = vadd.f32 %v1808, %v1877
    %v1879 = vpop.f32.mrb[0].mxu0
    %1880 = vdwg.mxu0
    %1881 = vmatprep.subr.mxu0 0.0
    %1882 = vmatpush1.msra.mxu0 %v605
    %1883 = vmatprep.subr.mxu0 0.0
    %1884 = vmatpush1.msra.mxu0 %v606
    %1885 = vmatprep.subr.mxu0 0.0
    %1886 = vmatpush1.msra.mxu0 %v607
    %1887 = vmatprep.subr.mxu0 0.0
    %1888 = vmatpush1.msra.mxu0 %v608
    %1889 = vmatprep.subr.mxu0 0.0
    %1890 = vmatpush1.msra.mxu0 %v609
    %1891 = vmatprep.subr.mxu0 0.0
    %1892 = vmatpush1.msra.mxu0 %v610
    %1893 = vmatprep.subr.mxu0 0.0
    %1894 = vmatpush1.msra.mxu0 %v611
    %1895 = vmatprep.subr.mxu0 0.0
    %1896 = vmatpush1.msra.mxu0 %v612
    %1897 = vmatprep.subr.mxu0 0.0
    %1898 = vmatpush1.msra.mxu0 %v613
    %1899 = vmatprep.subr.mxu0 0.0
    %1900 = vmatpush1.msra.mxu0 %v614
    %1901 = vmatprep.subr.mxu0 0.0
    %1902 = vmatpush1.msra.mxu0 %v615
    %1903 = vmatprep.subr.mxu0 0.0
    %1904 = vmatpush1.msra.mxu0 %v616
    %1905 = vmatprep.subr.mxu0 0.0
    %1906 = vmatpush1.msra.mxu0 %v617
    %1907 = vmatprep.subr.mxu0 0.0
    %1908 = vmatpush1.msra.mxu0 %v618
    %1909 = vmatprep.subr.mxu0 0.0
    %1910 = vmatpush1.msra.mxu0 %v619
    %1911 = vmatprep.subr.mxu0 0.0
    %1912 = vmatpush1.msra.mxu0 %v620
    %1913 = vmatprep.subr.mxu0 0.0
    %1914 = vmatpush1.msra.mxu0 %v621
    %1915 = vmatprep.subr.mxu0 0.0
    %1916 = vmatpush1.msra.mxu0 %v622
    %1917 = vmatprep.subr.mxu0 0.0
    %1918 = vmatpush1.msra.mxu0 %v623
    %1919 = vmatprep.subr.mxu0 0.0
    %1920 = vmatpush1.msra.mxu0 %v624
    %1921 = vmatprep.subr.mxu0 0.0
    %1922 = vmatpush1.msra.mxu0 %v625
    %1923 = vmatprep.subr.mxu0 0.0
    %1924 = vmatpush1.msra.mxu0 %v626
    %1925 = vmatprep.subr.mxu0 0.0
    %1926 = vmatpush1.msra.mxu0 %v627
    %1927 = vmatprep.subr.mxu0 0.0
    %1928 = vmatpush1.msra.mxu0 %v628
    %1929 = vmatprep.subr.mxu0 0.0
    %1930 = vmatpush1.msra.mxu0 %v629
    %1931 = vmatprep.subr.mxu0 0.0
    %1932 = vmatpush1.msra.mxu0 %v630
    %1933 = vmatprep.subr.mxu0 0.0
    %1934 = vmatpush1.msra.mxu0 %v631
    %1935 = vmatprep.subr.mxu0 0.0
    %1936 = vmatpush1.msra.mxu0 %v632
    %1937 = vmatprep.subr.mxu0 0.0
    %1938 = vmatpush1.msra.mxu0 %v633
    %1939 = vmatprep.subr.mxu0 0.0
    %1940 = vmatpush1.msra.mxu0 %v634
    %1941 = vmatprep.subr.mxu0 0.0
    %1942 = vmatpush1.msra.mxu0 %v635
    %1943 = vmatprep.subr.mxu0 0.0
    %1944 = vmatpush1.msra.mxu0 %v636
    %1945 = vmatprep.mubr.f32.mxu0 %v1662
    %1946 = vmatmul.mubr.f32.gmra.mrb[0].mxu0 %v1660
    %v1947 = vpop.f32.mrb[0].mxu0
    %v1948 = vadd.f32 %v1878, %v1947
    %v1949 = vpop.f32.mrb[0].mxu0
    %1950 = vdwg.mxu0
    %v1951 = vadd.f32 %v1626, %v1948
    %1952 = vst [vmem:[#allocation2 + $0x6] sm:$0x3] %v1951
    // Predicated region
    $region70: #{tpu_custom_call.1} parent=1 // pred_check
      %p1953 = pneg %p120
    $region71: #{tpu_custom_call.1} parent=1 // pred_check_branch
      %1955 = sbr.rel (%p1953) target = $region73
    $region72: #{tpu_custom_call.1} parent=1 // pred_region
      %v1956 = vld [vmem:[#allocation2] sm:$0xff]
      %v1957 = vld [vmem:[%s6] sm:$0xf]
      %v1959 = vlaneseq
      %v1960 = vshrl.u32 %v1959, 7
      %v1961 = vsub.s32 0, %v1960
      %v1962 = vrot.slane %v1957, %v1961
      %v1963 = vlaneseq
      %v1964 = vshrl.u32 %v1963, 7
      %v1965 = vsub.s32 1, %v1964
      %v1966 = vrot.slane %v1957, %v1965
      %v1967 = vlaneseq
      %v1968 = vshrl.u32 %v1967, 7
      %v1969 = vsub.s32 2, %v1968
      %v1970 = vrot.slane %v1957, %v1969
      %v1971 = vlaneseq
      %v1972 = vshrl.u32 %v1971, 7
      %v1973 = vsub.s32 3, %v1972
      %v1974 = vrot.slane %v1957, %v1973
      %v1975 = vcombine.low %v1962, %v1966
      %v1976 = vcombine.low %v1970, %v1974
      %v1978 = vunpack.c.l.s4 1983009808
      %v1979 = vunpack.c.0.s8 %v1978
      %v1980 = vlaneseq
      %v1981 = vshrl.u32 %v1980, 7
      %v1982 = vsub.s32 %v1979, %v1981
      %v1983 = vrot.slane %v1975, %v1982
      %v1985 = vunpack.c.l.s4 1983009808
      %v1986 = vunpack.c.0.s8 %v1985
      %v1987 = vlaneseq
      %v1988 = vshrl.u32 %v1987, 7
      %v1989 = vsub.s32 %v1986, %v1988
      %v1990 = vrot.slane %v1976, %v1989
      %v1991 = vcombine.low %v1983, %v1990
      %v1993 = vadd.f32 %v1956, %v1991
      %v1994 = vmax.f32 %v1993, 0.0
      %v1995 = vld [vmem:[%s8] sm:$0x1]
      %v1996 = vld [vmem:[#allocation14] sm:$0xff]
      %v1997 = vld [vmem:[#allocation14 + $0x8] sm:$0xff]
      %v1998 = vld [vmem:[#allocation14 + $0x10] sm:$0xff]
      %v1999 = vld [vmem:[#allocation14 + $0x18] sm:$0xff]
      %v2000 = vld [vmem:[#allocation14 + $0x20] sm:$0xff]
      %v2001 = vld [vmem:[#allocation14 + $0x28] sm:$0xff]
      %v2002 = vld [vmem:[#allocation14 + $0x30] sm:$0xff]
      %v2003 = vld [vmem:[#allocation14 + $0x38] sm:$0xff]
      %v2004 = vld [vmem:[#allocation14 + $0x40] sm:$0xff]
      %v2005 = vld [vmem:[#allocation14 + $0x48] sm:$0xff]
      %v2006 = vld [vmem:[#allocation14 + $0x50] sm:$0xff]
      %v2007 = vld [vmem:[#allocation14 + $0x58] sm:$0xff]
      %v2008 = vld [vmem:[#allocation14 + $0x60] sm:$0xff]
      %v2009 = vld [vmem:[#allocation14 + $0x68] sm:$0xff]
      %v2010 = vld [vmem:[#allocation14 + $0x70] sm:$0xff]
      %v2011 = vld [vmem:[#allocation14 + $0x78] sm:$0xff]
      %v2012 = vld [vmem:[#allocation14 + $0x80] sm:$0xff]
      %v2013 = vld [vmem:[#allocation14 + $0x88] sm:$0xff]
      %v2014 = vld [vmem:[#allocation14 + $0x90] sm:$0xff]
      %v2015 = vld [vmem:[#allocation14 + $0x98] sm:$0xff]
      %v2016 = vld [vmem:[#allocation14 + $0xa0] sm:$0xff]
      %v2017 = vld [vmem:[#allocation14 + $0xa8] sm:$0xff]
      %v2018 = vld [vmem:[#allocation14 + $0xb0] sm:$0xff]
      %v2019 = vld [vmem:[#allocation14 + $0xb8] sm:$0xff]
      %v2020 = vld [vmem:[#allocation14 + $0xc0] sm:$0xff]
      %v2021 = vld [vmem:[#allocation14 + $0xc8] sm:$0xff]
      %v2022 = vld [vmem:[#allocation14 + $0xd0] sm:$0xff]
      %v2023 = vld [vmem:[#allocation14 + $0xd8] sm:$0xff]
      %v2024 = vld [vmem:[#allocation14 + $0xe0] sm:$0xff]
      %v2025 = vld [vmem:[#allocation14 + $0xe8] sm:$0xff]
      %v2026 = vld [vmem:[#allocation14 + $0xf0] sm:$0xff]
      %v2027 = vld [vmem:[#allocation14 + $0xf8] sm:$0xff]
      %v2028 = vld [vmem:[#allocation14 + $0x100] sm:$0xff]
      %v2029 = vld [vmem:[#allocation14 + $0x108] sm:$0xff]
      %v2030 = vld [vmem:[#allocation14 + $0x110] sm:$0xff]
      %v2031 = vld [vmem:[#allocation14 + $0x118] sm:$0xff]
      %v2032 = vld [vmem:[#allocation14 + $0x120] sm:$0xff]
      %v2033 = vld [vmem:[#allocation14 + $0x128] sm:$0xff]
      %v2034 = vld [vmem:[#allocation14 + $0x130] sm:$0xff]
      %v2035 = vld [vmem:[#allocation14 + $0x138] sm:$0xff]
      %v2036 = vld [vmem:[#allocation14 + $0x140] sm:$0xff]
      %v2037 = vld [vmem:[#allocation14 + $0x148] sm:$0xff]
      %v2038 = vld [vmem:[#allocation14 + $0x150] sm:$0xff]
      %v2039 = vld [vmem:[#allocation14 + $0x158] sm:$0xff]
      %v2040 = vld [vmem:[#allocation14 + $0x160] sm:$0xff]
      %v2041 = vld [vmem:[#allocation14 + $0x168] sm:$0xff]
      %v2042 = vld [vmem:[#allocation14 + $0x170] sm:$0xff]
      %v2043 = vld [vmem:[#allocation14 + $0x178] sm:$0xff]
      %v2044 = vld [vmem:[#allocation14 + $0x180] sm:$0xff]
      %v2045 = vld [vmem:[#allocation14 + $0x188] sm:$0xff]
      %v2046 = vld [vmem:[#allocation14 + $0x190] sm:$0xff]
      %v2047 = vld [vmem:[#allocation14 + $0x198] sm:$0xff]
      %v2048 = vld [vmem:[#allocation14 + $0x1a0] sm:$0xff]
      %v2049 = vld [vmem:[#allocation14 + $0x1a8] sm:$0xff]
      %v2050 = vld [vmem:[#allocation14 + $0x1b0] sm:$0xff]
      %v2051 = vld [vmem:[#allocation14 + $0x1b8] sm:$0xff]
      %v2052 = vld [vmem:[#allocation14 + $0x1c0] sm:$0xff]
      %v2053 = vld [vmem:[#allocation14 + $0x1c8] sm:$0xff]
      %v2054 = vld [vmem:[#allocation14 + $0x1d0] sm:$0xff]
      %v2055 = vld [vmem:[#allocation14 + $0x1d8] sm:$0xff]
      %v2056 = vld [vmem:[#allocation14 + $0x1e0] sm:$0xff]
      %v2057 = vld [vmem:[#allocation14 + $0x1e8] sm:$0xff]
      %v2058 = vld [vmem:[#allocation14 + $0x1f0] sm:$0xff]
      %v2059 = vld [vmem:[#allocation14 + $0x1f8] sm:$0xff]
      %v2061 = vcombine.high %v1994, %v1994
      %v2063 = vunpack.c.l.s4 1983009808
      %v2064 = vunpack.c.0.s8 %v2063
      %v2065 = vlaneseq
      %v2066 = vshrl.u32 %v2065, 7
      %v2067 = vsub.s32 %v2064, %v2066
      %v2068 = vrot.slane %v1994, %v2067
      %v2070 = vunpack.c.l.s4 1983009808
      %v2071 = vunpack.c.0.s8 %v2070
      %v2072 = vlaneseq
      %v2073 = vshrl.u32 %v2072, 7
      %v2074 = vsub.s32 %v2071, %v2073
      %v2075 = vrot.slane %v2061, %v2074
      %v2076 = vcombine.high %v2068, %v2068
      %v2077 = vcombine.high %v2075, %v2075
      %2082 = vmatprep.subr.mxu0 0.0
      %2083 = vmatpush1.msra.mxu0 %v1996
      %2084 = vmatprep.subr.mxu0 0.0
      %2085 = vmatpush1.msra.mxu0 %v1997
      %2086 = vmatprep.subr.mxu0 0.0
      %2087 = vmatpush1.msra.mxu0 %v1998
      %2088 = vmatprep.subr.mxu0 0.0
      %2089 = vmatpush1.msra.mxu0 %v1999
      %2090 = vmatprep.subr.mxu0 0.0
      %2091 = vmatpush1.msra.mxu0 %v2000
      %2092 = vmatprep.subr.mxu0 0.0
      %2093 = vmatpush1.msra.mxu0 %v2001
      %2094 = vmatprep.subr.mxu0 0.0
      %2095 = vmatpush1.msra.mxu0 %v2002
      %2096 = vmatprep.subr.mxu0 0.0
      %2097 = vmatpush1.msra.mxu0 %v2003
      %2098 = vmatprep.subr.mxu0 0.0
      %2099 = vmatpush1.msra.mxu0 %v2004
      %2100 = vmatprep.subr.mxu0 0.0
      %2101 = vmatpush1.msra.mxu0 %v2005
      %2102 = vmatprep.subr.mxu0 0.0
      %2103 = vmatpush1.msra.mxu0 %v2006
      %2104 = vmatprep.subr.mxu0 0.0
      %2105 = vmatpush1.msra.mxu0 %v2007
      %2106 = vmatprep.subr.mxu0 0.0
      %2107 = vmatpush1.msra.mxu0 %v2008
      %2108 = vmatprep.subr.mxu0 0.0
      %2109 = vmatpush1.msra.mxu0 %v2009
      %2110 = vmatprep.subr.mxu0 0.0
      %2111 = vmatpush1.msra.mxu0 %v2010
      %2112 = vmatprep.subr.mxu0 0.0
      %2113 = vmatpush1.msra.mxu0 %v2011
      %2114 = vmatprep.subr.mxu0 0.0
      %2115 = vmatpush1.msra.mxu0 %v2012
      %2116 = vmatprep.subr.mxu0 0.0
      %2117 = vmatpush1.msra.mxu0 %v2013
      %2118 = vmatprep.subr.mxu0 0.0
      %2119 = vmatpush1.msra.mxu0 %v2014
      %2120 = vmatprep.subr.mxu0 0.0
      %2121 = vmatpush1.msra.mxu0 %v2015
      %2122 = vmatprep.subr.mxu0 0.0
      %2123 = vmatpush1.msra.mxu0 %v2016
      %2124 = vmatprep.subr.mxu0 0.0
      %2125 = vmatpush1.msra.mxu0 %v2017
      %2126 = vmatprep.subr.mxu0 0.0
      %2127 = vmatpush1.msra.mxu0 %v2018
      %2128 = vmatprep.subr.mxu0 0.0
      %2129 = vmatpush1.msra.mxu0 %v2019
      %2130 = vmatprep.subr.mxu0 0.0
      %2131 = vmatpush1.msra.mxu0 %v2020
      %2132 = vmatprep.subr.mxu0 0.0
      %2133 = vmatpush1.msra.mxu0 %v2021
      %2134 = vmatprep.subr.mxu0 0.0
      %2135 = vmatpush1.msra.mxu0 %v2022
      %2136 = vmatprep.subr.mxu0 0.0
      %2137 = vmatpush1.msra.mxu0 %v2023
      %2138 = vmatprep.subr.mxu0 0.0
      %2139 = vmatpush1.msra.mxu0 %v2024
      %2140 = vmatprep.subr.mxu0 0.0
      %2141 = vmatpush1.msra.mxu0 %v2025
      %2142 = vmatprep.subr.mxu0 0.0
      %2143 = vmatpush1.msra.mxu0 %v2026
      %2144 = vmatprep.subr.mxu0 0.0
      %2145 = vmatpush1.msra.mxu0 %v2027
      %2146 = vmatprep.mubr.f32.mxu0 %v2076
      %2147 = vmatmul.mubr.f32.gmra.mrb[0].mxu0 %v2068
      %v2148 = vpop.f32.mrb[0].mxu0
      %v2149 = vadd.f32 0.0, %v2148
      %v2150 = vpop.f32.mrb[0].mxu0
      %2151 = vdwg.mxu0
      %2152 = vmatprep.subr.mxu0 0.0
      %2153 = vmatpush1.msra.mxu0 %v2028
      %2154 = vmatprep.subr.mxu0 0.0
      %2155 = vmatpush1.msra.mxu0 %v2029
      %2156 = vmatprep.subr.mxu0 0.0
      %2157 = vmatpush1.msra.mxu0 %v2030
      %2158 = vmatprep.subr.mxu0 0.0
      %2159 = vmatpush1.msra.mxu0 %v2031
      %2160 = vmatprep.subr.mxu0 0.0
      %2161 = vmatpush1.msra.mxu0 %v2032
      %2162 = vmatprep.subr.mxu0 0.0
      %2163 = vmatpush1.msra.mxu0 %v2033
      %2164 = vmatprep.subr.mxu0 0.0
      %2165 = vmatpush1.msra.mxu0 %v2034
      %2166 = vmatprep.subr.mxu0 0.0
      %2167 = vmatpush1.msra.mxu0 %v2035
      %2168 = vmatprep.subr.mxu0 0.0
      %2169 = vmatpush1.msra.mxu0 %v2036
      %2170 = vmatprep.subr.mxu0 0.0
      %2171 = vmatpush1.msra.mxu0 %v2037
      %2172 = vmatprep.subr.mxu0 0.0
      %2173 = vmatpush1.msra.mxu0 %v2038
      %2174 = vmatprep.subr.mxu0 0.0
      %2175 = vmatpush1.msra.mxu0 %v2039
      %2176 = vmatprep.subr.mxu0 0.0
      %2177 = vmatpush1.msra.mxu0 %v2040
      %2178 = vmatprep.subr.mxu0 0.0
      %2179 = vmatpush1.msra.mxu0 %v2041
      %2180 = vmatprep.subr.mxu0 0.0
      %2181 = vmatpush1.msra.mxu0 %v2042
      %2182 = vmatprep.subr.mxu0 0.0
      %2183 = vmatpush1.msra.mxu0 %v2043
      %2184 = vmatprep.subr.mxu0 0.0
      %2185 = vmatpush1.msra.mxu0 %v2044
      %2186 = vmatprep.subr.mxu0 0.0
      %2187 = vmatpush1.msra.mxu0 %v2045
      %2188 = vmatprep.subr.mxu0 0.0
      %2189 = vmatpush1.msra.mxu0 %v2046
      %2190 = vmatprep.subr.mxu0 0.0
      %2191 = vmatpush1.msra.mxu0 %v2047
      %2192 = vmatprep.subr.mxu0 0.0
      %2193 = vmatpush1.msra.mxu0 %v2048
      %2194 = vmatprep.subr.mxu0 0.0
      %2195 = vmatpush1.msra.mxu0 %v2049
      %2196 = vmatprep.subr.mxu0 0.0
      %2197 = vmatpush1.msra.mxu0 %v2050
      %2198 = vmatprep.subr.mxu0 0.0
      %2199 = vmatpush1.msra.mxu0 %v2051
      %2200 = vmatprep.subr.mxu0 0.0
      %2201 = vmatpush1.msra.mxu0 %v2052
      %2202 = vmatprep.subr.mxu0 0.0
      %2203 = vmatpush1.msra.mxu0 %v2053
      %2204 = vmatprep.subr.mxu0 0.0
      %2205 = vmatpush1.msra.mxu0 %v2054
      %2206 = vmatprep.subr.mxu0 0.0
      %2207 = vmatpush1.msra.mxu0 %v2055
      %2208 = vmatprep.subr.mxu0 0.0
      %2209 = vmatpush1.msra.mxu0 %v2056
      %2210 = vmatprep.subr.mxu0 0.0
      %2211 = vmatpush1.msra.mxu0 %v2057
      %2212 = vmatprep.subr.mxu0 0.0
      %2213 = vmatpush1.msra.mxu0 %v2058
      %2214 = vmatprep.subr.mxu0 0.0
      %2215 = vmatpush1.msra.mxu0 %v2059
      %2216 = vmatprep.mubr.f32.mxu0 %v2077
      %2217 = vmatmul.mubr.f32.gmra.mrb[0].mxu0 %v2075
      %v2218 = vpop.f32.mrb[0].mxu0
      %v2219 = vadd.f32 %v2149, %v2218
      %v2220 = vpop.f32.mrb[0].mxu0
      %2221 = vdwg.mxu0
      %v2223 = vlaneseq
      %v2224 = vshrl.u32 %v2223, 7
      %v2225 = vsub.s32 0, %v2224
      %v2226 = vrot.slane %v1995, %v2225
      %v2228 = vadd.f32 %v2226, %v2219
      %2229 = vst [vmem:[#allocation15] sm:$0x3] %v2228
    $region73: #{tpu_custom_call.1} parent=1 // pred_fallthru
      _
    // Predicated region
    $region74: #{tpu_custom_call.1} parent=1 // pred_check
      _
    $region75: #{tpu_custom_call.1} parent=1 // pred_check_branch
      %2231 = sbr.rel (0) target = $region77
    $region76: #{tpu_custom_call.1} parent=1 // pred_region
      %s2233 = ssub.s32 32, 32
      %2234 = vsyncadd [#allocation5], %s2233
      %s2236 = sshll.u32 [#allocation15], 4
      %s2237 = int_to_ptr.vmem [resolvable:$true] %s2236
      %2239 = dma.vmem_to_hbm [thread:$0]  %s2237, 32, %s9, [#allocation5]
    $region77: #{tpu_custom_call.1} parent=1 // pred_fallthru
      _
    // Predicated region
    $region78: #{tpu_custom_call.1} parent=1 // pred_check
      _
    $region79: #{tpu_custom_call.1} parent=1 // pred_check_branch
      %2241 = sbr.rel (0) target = $region81
    $region80: #{tpu_custom_call.1} parent=1 // pred_region
      %2242 = dma.done [#allocation5], 32
    $region81: #{tpu_custom_call.1} parent=1 // pred_fallthru
      _
    %2243 = vsyncpa [#allocation4], 1
    %2244 = vsyncpa [#allocation7], 1
    %2245 = vsyncpa [#allocation10], 1
    %2246 = vsyncpa [#allocation13], 1
    %2247 = vsyncpa [#allocation5], 1

</llo_original>
